<compile_context>
chip_gen: v7x
topology: tpu7x:2x2x1
jax: 0.10.0
libtpu: 0.0.40
codegen_flags: <defaults>
</compile_context>

<pallas_src>
import numpy as np

import jax
import jax.numpy as jnp
from jax import lax
from jax.experimental import pallas as pl
from jax.experimental.pallas import tpu as pltpu


# ----------------------------------------------------------------------------
# Model configuration (small, consistent with the module's forward semantics)
# ----------------------------------------------------------------------------
B = 2            # batch
S = 8            # sequence length
V = 256          # total_items (vocab / output dim)
E = 16           # item_embed_size
H = 32           # rnn_size
Z = 16           # total_z_dim (single component of dim 16)
ENC_HID = 32     # encoder_dims = [rnn_size, 32]
# decoder_dims (after inserting total_z_dim) = [Z, 32, V]


# ----------------------------------------------------------------------------
# Pallas kernel
# ----------------------------------------------------------------------------
def make_seqvae_kernel(Bv, Sv, Hv, Zv, n_enc, n_dec):
  """Builds the whole-batch SeqVAE forward kernel (single invocation)."""
  BS = Bv * Sv

  def kernel(*refs):
    i = 0
    emb_ref, eps_ref, wih_ref, whh_ref, bpre_ref, bhhn_ref = refs[i:i + 6]
    i += 6
    enc = [(refs[i + 2 * j], refs[i + 2 * j + 1]) for j in range(n_enc)]
    i += 2 * n_enc
    whead_ref, bhead_ref = refs[i:i + 2]
    i += 2
    dec = [(refs[i + 2 * j], refs[i + 2 * j + 1]) for j in range(n_dec)]
    i += 2 * n_dec
    out_x_ref, out_mulv_ref = refs[i:i + 2]
    i += 2
    rnn_scr, = refs[i:]

    f32 = jnp.float32

    def sigmoid(v):
      # exact: sigmoid(x) = 0.5*(tanh(x/2)+1); tanh runs on the EUP slot
      return 0.5 * (jnp.tanh(0.5 * v) + 1.0)

    # --- fused input-to-hidden projection for all timesteps & gates --------
    # gi = x @ [Wih_r|Wih_z|Wih_n] + (b_ih + [b_hh_r, b_hh_z, 0])
    x2d = emb_ref[...].reshape(BS, -1)                              # (B*S, E)
    gi = (jnp.dot(x2d, wih_ref[...], preferred_element_type=f32)
          + bpre_ref[...]).reshape(Bv, Sv, 3 * Hv)                  # (B, S, 3H)

    whh = whh_ref[...]                                              # (H, 3H)
    bhh_n = bhhn_ref[...]                                           # (1, H)

    # --- GRU recurrence: h carried in registers, statically unrolled -------
    h = jnp.zeros((Bv, Hv), f32)
    for t in range(Sv):
      gh = jnp.dot(h, whh, preferred_element_type=f32)              # (B, 3H)
      gi_t = gi[:, t, :]                                            # (B, 3H)
      r = sigmoid(gi_t[:, :Hv] + gh[:, :Hv])
      zg = sigmoid(gi_t[:, Hv:2 * Hv] + gh[:, Hv:2 * Hv])
      n = jnp.tanh(gi_t[:, 2 * Hv:] + r * (gh[:, 2 * Hv:] + bhh_n))
      h = (1.0 - zg) * n + zg * h
      rnn_scr[:, t, :] = h

    # row ordering matches PyTorch rnn_out.view(B*S, -1): row = b*S + s
    rnn = rnn_scr[...].reshape(BS, Hv)

    # --- encode: F.normalize (L2, eps=1e-12), dropout=identity, Linear+tanh -
    ssq = jnp.sum(rnn * rnn, axis=-1, keepdims=True)
    xe = rnn * lax.rsqrt(jnp.maximum(ssq, 1e-24))
    for w_ref, b_ref in enc:
      xe = jnp.tanh(jnp.dot(xe, w_ref[...], preferred_element_type=f32)
                    + b_ref[...])

    # --- component: fused [mu | logvar] head + reparametrization -----------
    mulv = jnp.dot(xe, whead_ref[...], preferred_element_type=f32) + bhead_ref[...]
    mu = mulv[:, :Zv]
    logvar = mulv[:, Zv:]
    z = mu + jnp.exp(0.5 * logvar) * eps_ref[...].reshape(BS, Zv)

    # --- decode: tanh hidden layers + final linear to total_items ----------
    hdec = z
    for w_ref, b_ref in dec[:-1]:
      hdec = jnp.tanh(jnp.dot(hdec, w_ref[...], preferred_element_type=f32)
                      + b_ref[...])
    w_last, b_last = dec[-1]
    logits = jnp.dot(hdec, w_last[...], preferred_element_type=f32) + b_last[...]

    out_x_ref[...] = logits.reshape(Bv, Sv, -1)
    out_mulv_ref[...] = mulv.reshape(Bv, Sv, 2 * Zv)

  return kernel


def seqvae_forward_pallas(item_ids, eps, P):
  """Runs SeqVAE.forward. Returns (x_, z_mean, z_log_sigma)."""
  Bv, Sv = item_ids.shape
  Vv, Ev = P["emb"].shape
  Hv = P["w_hh"].shape[-1]
  Zv = P["w_mu"].shape[-1]
  n_enc, n_dec = len(P["enc"]), len(P["dec"])

  # glue: embedding lookup (gather)
  emb = jnp.take(P["emb"], item_ids, axis=0).astype(jnp.float32)    # (B, S, E)

  # stack GRU gate weights along lanes: [reset | update | new]
  w_ih = jnp.concatenate([P["w_ih"][0], P["w_ih"][1], P["w_ih"][2]], axis=-1)  # (E, 3H)
  w_hh = jnp.concatenate([P["w_hh"][0], P["w_hh"][1], P["w_hh"][2]], axis=-1)  # (H, 3H)
  # fold b_ih (all gates) and b_hh for r/z into the precomputed term; the
  # n-gate hidden bias must stay inside the r-multiply.
  b_pre = jnp.concatenate([P["b_ih"][0] + P["b_hh"][0],
                           P["b_ih"][1] + P["b_hh"][1],
                           P["b_ih"][2]], axis=-1)                  # (1, 3H)
  b_hh_n = P["b_hh"][2]                                             # (1, H)
  # fused component heads: [mu | logvar]
  w_head = jnp.concatenate([P["w_mu"], P["w_lv"]], axis=-1)         # (ENC_HID, 2Z)
  b_head = jnp.concatenate([P["b_mu"], P["b_lv"]], axis=-1)         # (1, 2Z)

  inputs = [emb, eps, w_ih, w_hh, b_pre, b_hh_n]
  for w, b in P["enc"]:
    inputs += [w, b]
  inputs += [w_head, b_head]
  for w, b in P["dec"]:
    inputs += [w, b]

  kernel = make_seqvae_kernel(Bv, Sv, Hv, Zv, n_enc, n_dec)
  logits, mulv = pl.pallas_call(
      kernel,
      out_shape=(
          jax.ShapeDtypeStruct((Bv, Sv, Vv), jnp.float32),
          jax.ShapeDtypeStruct((Bv, Sv, 2 * Zv), jnp.float32),
      ),
      scratch_shapes=[pltpu.VMEM((Bv, Sv, Hv), jnp.float32)],  # GRU outputs
  )(*inputs)

  # PyTorch forward returns x_ as (B, S, V), z_mean/z_log_sigma as (B*S, Z).
  mu = mulv[..., :Zv].reshape(Bv * Sv, Zv)
  logvar = mulv[..., Zv:].reshape(Bv * Sv, Zv)
  return logits, mu, logvar


# ----------------------------------------------------------------------------
# Pure-JAX reference (same math, per-gate weights) for a sanity check
# ----------------------------------------------------------------------------
def seqvae_forward_ref(item_ids, eps, P):
  Bv, Sv = item_ids.shape
  emb = jnp.take(P["emb"], item_ids, axis=0)  # (B, S, E)
  Hv = P["w_hh"].shape[-1]

  def cell(h, x_t):
    r = jax.nn.sigmoid(x_t @ P["w_ih"][0] + P["b_ih"][0] + h @ P["w_hh"][0] + P["b_hh"][0])
    zg = jax.nn.sigmoid(x_t @ P["w_ih"][1] + P["b_ih"][1] + h @ P["w_hh"][1] + P["b_hh"][1])
    n = jnp.tanh(x_t @ P["w_ih"][2] + P["b_ih"][2] + r * (h @ P["w_hh"][2] + P["b_hh"][2]))
    h_new = (1.0 - zg) * n + zg * h
    return h_new, h_new

  h0 = jnp.zeros((Bv, Hv), jnp.float32)
  _, hs = lax.scan(cell, h0, jnp.transpose(emb, (1, 0, 2)))  # (S, B, H)
  rnn = jnp.transpose(hs, (1, 0, 2)).reshape(Bv * Sv, Hv)

  nrm = jnp.sqrt(jnp.sum(rnn * rnn, axis=-1, keepdims=True))
  xe = rnn / jnp.maximum(nrm, 1e-12)
  for w, b in P["enc"]:
    xe = jnp.tanh(xe @ w + b)
  mu = xe @ P["w_mu"] + P["b_mu"]
  logvar = xe @ P["w_lv"] + P["b_lv"]
  z = mu + jnp.exp(0.5 * logvar) * eps.reshape(Bv * Sv, -1)
  hd = z
  for w, b in P["dec"][:-1]:
    hd = jnp.tanh(hd @ w + b)
  wl, bl = P["dec"][-1]
  logits = hd @ wl + bl
  return logits.reshape(Bv, Sv, -1), mu, logvar


# ----------------------------------------------------------------------------
# Deterministic parameter initialization (mirrors SeqVAE.__init__/init_weights)
# ----------------------------------------------------------------------------
def init_params(key):
  keys = jax.random.split(key, 12)
  kgru = 1.0 / np.sqrt(H)

  def linear_init(k, din, dout):
    std = np.sqrt(2.0 / (din + dout))
    kw, kb = jax.random.split(k)
    w = (std * jax.random.normal(kw, (din, dout))).astype(jnp.float32)
    b = (0.001 * jax.random.normal(kb, (1, dout))).astype(jnp.float32)
    return w, b

  P = {
      "emb": jax.random.normal(keys[0], (V, E), jnp.float32),
      # GRU weights stacked by gate (reset, update, new), stored transposed
      # (in_features, out_features) relative to PyTorch layout.
      "w_ih": jax.random.uniform(keys[1], (3, E, H), jnp.float32, -kgru, kgru),
      "w_hh": jax.random.uniform(keys[2], (3, H, H), jnp.float32, -kgru, kgru),
      "b_ih": jax.random.uniform(keys[3], (3, 1, H), jnp.float32, -kgru, kgru),
      "b_hh": jax.random.uniform(keys[4], (3, 1, H), jnp.float32, -kgru, kgru),
      # encoder_dims = [rnn_size, 32]
      "enc": [linear_init(keys[5], H, ENC_HID)],
      # decoder_dims = [Z, 32, V] (after total_z_dim insert)
      "dec": [linear_init(keys[8], Z, ENC_HID), linear_init(keys[9], ENC_HID, V)],
  }
  P["w_mu"], P["b_mu"] = linear_init(keys[6], ENC_HID, Z)
  P["w_lv"], P["b_lv"] = linear_init(keys[7], ENC_HID, Z)
  return P, keys[10], keys[11]


if __name__ == "__main__":
  params, k_ids, k_eps = init_params(jax.random.PRNGKey(0))
  item_ids = jax.random.randint(k_ids, (B, S), 0, V, dtype=jnp.int32)
  eps = jax.random.normal(k_eps, (B, S, Z), jnp.float32)

  fwd = jax.jit(seqvae_forward_pallas)
  x_out, z_mean, z_log_sigma = fwd(item_ids, eps, params)
  jax.block_until_ready((x_out, z_mean, z_log_sigma))

  # sanity check against pure-JAX reference
  x_ref, mu_ref, lv_ref = seqvae_forward_ref(item_ids, eps, params)
  assert x_out.shape == (B, S, V)
  assert z_mean.shape == (B * S, Z) and z_log_sigma.shape == (B * S, Z)
  assert np.all(np.isfinite(np.asarray(x_out)))
  np.testing.assert_allclose(np.asarray(x_out), np.asarray(x_ref), rtol=5e-2, atol=5e-2)
  np.testing.assert_allclose(np.asarray(z_mean), np.asarray(mu_ref), rtol=5e-2, atol=5e-2)
  np.testing.assert_allclose(np.asarray(z_log_sigma), np.asarray(lv_ref), rtol=5e-2, atol=5e-2)

  print("KERNEL_OK")
</pallas_src>

<mosaic_0001>
module attributes {stable_mosaic.version = 11 : i64} {
  func.func @kernel(%arg0: memref<2x8x16xf32, #tpu.memory_space<vmem>>, %arg1: memref<2x8x16xf32, #tpu.memory_space<vmem>>, %arg2: memref<16x96xf32, #tpu.memory_space<vmem>>, %arg3: memref<32x96xf32, #tpu.memory_space<vmem>>, %arg4: memref<1x96xf32, #tpu.memory_space<vmem>>, %arg5: memref<1x32xf32, #tpu.memory_space<vmem>>, %arg6: memref<32x32xf32, #tpu.memory_space<vmem>>, %arg7: memref<1x32xf32, #tpu.memory_space<vmem>>, %arg8: memref<32x32xf32, #tpu.memory_space<vmem>>, %arg9: memref<1x32xf32, #tpu.memory_space<vmem>>, %arg10: memref<16x32xf32, #tpu.memory_space<vmem>>, %arg11: memref<1x32xf32, #tpu.memory_space<vmem>>, %arg12: memref<32x256xf32, #tpu.memory_space<vmem>>, %arg13: memref<1x256xf32, #tpu.memory_space<vmem>>, %arg14: memref<2x8x256xf32, #tpu.memory_space<vmem>>, %arg15: memref<2x8x32xf32, #tpu.memory_space<vmem>>, %arg16: memref<2x8x32xf32, #tpu.memory_space<vmem>>) attributes {dimension_semantics = [], scalar_prefetch = 0 : i64, scratch_operands = 1 : i64, tpu.core_type = #tpu.core_type<tc>} {
    %c0 = arith.constant 0 : index
    %c0_0 = arith.constant 0 : index
    %c0_1 = arith.constant 0 : index
    %0 = vector.load %arg0[%c0, %c0_0, %c0_1] : memref<2x8x16xf32, #tpu.memory_space<vmem>>, vector<2x8x16xf32>
    %1 = vector.shape_cast %0 : vector<2x8x16xf32> to vector<16x16xf32>
    %c0_2 = arith.constant 0 : index
    %c0_3 = arith.constant 0 : index
    %2 = vector.load %arg2[%c0_2, %c0_3] : memref<16x96xf32, #tpu.memory_space<vmem>>, vector<16x96xf32>
    %cst = arith.constant dense<0.000000e+00> : vector<16x96xf32>
    %3 = tpu.matmul %1, %2, %cst {dimension_numbers = #tpu.dot_dimension_numbers<[1], [0], [0], [1], [0, 0, 1, 1], [], []>} : vector<16x16xf32>, vector<16x96xf32>, vector<16x96xf32> -> vector<16x96xf32>
    %c0_4 = arith.constant 0 : index
    %c0_5 = arith.constant 0 : index
    %4 = vector.load %arg4[%c0_4, %c0_5] : memref<1x96xf32, #tpu.memory_space<vmem>>, vector<1x96xf32>
    %5 = vector.broadcast %4 : vector<1x96xf32> to vector<16x96xf32>
    %6 = arith.addf %3, %5 : vector<16x96xf32>
    %7 = vector.shape_cast %6 : vector<16x96xf32> to vector<2x8x96xf32>
    %c0_6 = arith.constant 0 : index
    %c0_7 = arith.constant 0 : index
    %8 = vector.load %arg3[%c0_6, %c0_7] : memref<32x96xf32, #tpu.memory_space<vmem>>, vector<32x96xf32>
    %c0_8 = arith.constant 0 : index
    %c0_9 = arith.constant 0 : index
    %9 = vector.load %arg5[%c0_8, %c0_9] : memref<1x32xf32, #tpu.memory_space<vmem>>, vector<1x32xf32>
    %cst_10 = arith.constant 0.000000e+00 : f32
    %10 = vector.broadcast %cst_10 : f32 to vector<2x32xf32>
    %cst_11 = arith.constant dense<0.000000e+00> : vector<2x96xf32>
    %11 = tpu.matmul %10, %8, %cst_11 {dimension_numbers = #tpu.dot_dimension_numbers<[1], [0], [0], [1], [0, 0, 1, 1], [], []>} : vector<2x32xf32>, vector<32x96xf32>, vector<2x96xf32> -> vector<2x96xf32>
    %12 = vector.extract_strided_slice %7 {offsets = [0, 0, 0], sizes = [2, 1, 96], strides = [1, 1, 1]} : vector<2x8x96xf32> to vector<2x1x96xf32>
    %13 = vector.shape_cast %12 : vector<2x1x96xf32> to vector<2x96xf32>
    %14 = vector.extract_strided_slice %13 {offsets = [0, 0], sizes = [2, 32], strides = [1, 1]} : vector<2x96xf32> to vector<2x32xf32>
    %15 = vector.extract_strided_slice %11 {offsets = [0, 0], sizes = [2, 32], strides = [1, 1]} : vector<2x96xf32> to vector<2x32xf32>
    %16 = arith.addf %14, %15 : vector<2x32xf32>
    %cst_12 = arith.constant 5.000000e-01 : f32
    %17 = vector.broadcast %cst_12 : f32 to vector<2x32xf32>
    %18 = arith.mulf %17, %16 : vector<2x32xf32>
    %19 = math.tanh %18 : vector<2x32xf32>
    %cst_13 = arith.constant 1.000000e+00 : f32
    %20 = vector.broadcast %cst_13 : f32 to vector<2x32xf32>
    %21 = arith.addf %19, %20 : vector<2x32xf32>
    %cst_14 = arith.constant 5.000000e-01 : f32
    %22 = vector.broadcast %cst_14 : f32 to vector<2x32xf32>
    %23 = arith.mulf %22, %21 : vector<2x32xf32>
    %24 = vector.extract_strided_slice %13 {offsets = [0, 32], sizes = [2, 32], strides = [1, 1]} : vector<2x96xf32> to vector<2x32xf32>
    %25 = vector.extract_strided_slice %11 {offsets = [0, 32], sizes = [2, 32], strides = [1, 1]} : vector<2x96xf32> to vector<2x32xf32>
    %26 = arith.addf %24, %25 : vector<2x32xf32>
    %cst_15 = arith.constant 5.000000e-01 : f32
    %27 = vector.broadcast %cst_15 : f32 to vector<2x32xf32>
    %28 = arith.mulf %27, %26 : vector<2x32xf32>
    %29 = math.tanh %28 : vector<2x32xf32>
    %cst_16 = arith.constant 1.000000e+00 : f32
    %30 = vector.broadcast %cst_16 : f32 to vector<2x32xf32>
    %31 = arith.addf %29, %30 : vector<2x32xf32>
    %cst_17 = arith.constant 5.000000e-01 : f32
    %32 = vector.broadcast %cst_17 : f32 to vector<2x32xf32>
    %33 = arith.mulf %32, %31 : vector<2x32xf32>
    %34 = vector.extract_strided_slice %13 {offsets = [0, 64], sizes = [2, 32], strides = [1, 1]} : vector<2x96xf32> to vector<2x32xf32>
    %35 = vector.extract_strided_slice %11 {offsets = [0, 64], sizes = [2, 32], strides = [1, 1]} : vector<2x96xf32> to vector<2x32xf32>
    %36 = vector.broadcast %9 : vector<1x32xf32> to vector<2x32xf32>
    %37 = arith.addf %35, %36 : vector<2x32xf32>
    %38 = arith.mulf %23, %37 : vector<2x32xf32>
    %39 = arith.addf %34, %38 : vector<2x32xf32>
    %40 = math.tanh %39 : vector<2x32xf32>
    %cst_18 = arith.constant 1.000000e+00 : f32
    %41 = vector.broadcast %cst_18 : f32 to vector<2x32xf32>
    %42 = arith.subf %41, %33 : vector<2x32xf32>
    %43 = arith.mulf %42, %40 : vector<2x32xf32>
    %44 = arith.mulf %33, %10 : vector<2x32xf32>
    %45 = arith.addf %43, %44 : vector<2x32xf32>
    %c0_19 = arith.constant 0 : index
    %c0_20 = arith.constant 0 : index
    %c0_21 = arith.constant 0 : index
    %46 = vector.load %arg16[%c0_19, %c0_20, %c0_21] : memref<2x8x32xf32, #tpu.memory_space<vmem>>, vector<2x1x32xf32>
    %47 = vector.shape_cast %46 : vector<2x1x32xf32> to vector<2x32xf32>
    %48 = vector.shape_cast %45 : vector<2x32xf32> to vector<2x1x32xf32>
    tpu.vector_store %arg16[%c0_19, %c0_20, %c0_21], %48 {strides = array<i32>} : memref<2x8x32xf32, #tpu.memory_space<vmem>>, vector<2x1x32xf32>,
    %cst_22 = arith.constant dense<0.000000e+00> : vector<2x96xf32>
    %49 = tpu.matmul %45, %8, %cst_22 {dimension_numbers = #tpu.dot_dimension_numbers<[1], [0], [0], [1], [0, 0, 1, 1], [], []>} : vector<2x32xf32>, vector<32x96xf32>, vector<2x96xf32> -> vector<2x96xf32>
    %50 = vector.extract_strided_slice %7 {offsets = [0, 1, 0], sizes = [2, 1, 96], strides = [1, 1, 1]} : vector<2x8x96xf32> to vector<2x1x96xf32>
    %51 = vector.shape_cast %50 : vector<2x1x96xf32> to vector<2x96xf32>
    %52 = vector.extract_strided_slice %51 {offsets = [0, 0], sizes = [2, 32], strides = [1, 1]} : vector<2x96xf32> to vector<2x32xf32>
    %53 = vector.extract_strided_slice %49 {offsets = [0, 0], sizes = [2, 32], strides = [1, 1]} : vector<2x96xf32> to vector<2x32xf32>
    %54 = arith.addf %52, %53 : vector<2x32xf32>
    %cst_23 = arith.constant 5.000000e-01 : f32
    %55 = vector.broadcast %cst_23 : f32 to vector<2x32xf32>
    %56 = arith.mulf %55, %54 : vector<2x32xf32>
    %57 = math.tanh %56 : vector<2x32xf32>
    %cst_24 = arith.constant 1.000000e+00 : f32
    %58 = vector.broadcast %cst_24 : f32 to vector<2x32xf32>
    %59 = arith.addf %57, %58 : vector<2x32xf32>
    %cst_25 = arith.constant 5.000000e-01 : f32
    %60 = vector.broadcast %cst_25 : f32 to vector<2x32xf32>
    %61 = arith.mulf %60, %59 : vector<2x32xf32>
    %62 = vector.extract_strided_slice %51 {offsets = [0, 32], sizes = [2, 32], strides = [1, 1]} : vector<2x96xf32> to vector<2x32xf32>
    %63 = vector.extract_strided_slice %49 {offsets = [0, 32], sizes = [2, 32], strides = [1, 1]} : vector<2x96xf32> to vector<2x32xf32>
    %64 = arith.addf %62, %63 : vector<2x32xf32>
    %cst_26 = arith.constant 5.000000e-01 : f32
    %65 = vector.broadcast %cst_26 : f32 to vector<2x32xf32>
    %66 = arith.mulf %65, %64 : vector<2x32xf32>
    %67 = math.tanh %66 : vector<2x32xf32>
    %cst_27 = arith.constant 1.000000e+00 : f32
    %68 = vector.broadcast %cst_27 : f32 to vector<2x32xf32>
    %69 = arith.addf %67, %68 : vector<2x32xf32>
    %cst_28 = arith.constant 5.000000e-01 : f32
    %70 = vector.broadcast %cst_28 : f32 to vector<2x32xf32>
    %71 = arith.mulf %70, %69 : vector<2x32xf32>
    %72 = vector.extract_strided_slice %51 {offsets = [0, 64], sizes = [2, 32], strides = [1, 1]} : vector<2x96xf32> to vector<2x32xf32>
    %73 = vector.extract_strided_slice %49 {offsets = [0, 64], sizes = [2, 32], strides = [1, 1]} : vector<2x96xf32> to vector<2x32xf32>
    %74 = vector.broadcast %9 : vector<1x32xf32> to vector<2x32xf32>
    %75 = arith.addf %73, %74 : vector<2x32xf32>
    %76 = arith.mulf %61, %75 : vector<2x32xf32>
    %77 = arith.addf %72, %76 : vector<2x32xf32>
    %78 = math.tanh %77 : vector<2x32xf32>
    %cst_29 = arith.constant 1.000000e+00 : f32
    %79 = vector.broadcast %cst_29 : f32 to vector<2x32xf32>
    %80 = arith.subf %79, %71 : vector<2x32xf32>
    %81 = arith.mulf %80, %78 : vector<2x32xf32>
    %82 = arith.mulf %71, %45 : vector<2x32xf32>
    %83 = arith.addf %81, %82 : vector<2x32xf32>
    %c0_30 = arith.constant 0 : index
    %c1 = arith.constant 1 : index
    %c0_31 = arith.constant 0 : index
    %84 = vector.load %arg16[%c0_30, %c1, %c0_31] : memref<2x8x32xf32, #tpu.memory_space<vmem>>, vector<2x1x32xf32>
    %85 = vector.shape_cast %84 : vector<2x1x32xf32> to vector<2x32xf32>
    %86 = vector.shape_cast %83 : vector<2x32xf32> to vector<2x1x32xf32>
    tpu.vector_store %arg16[%c0_30, %c1, %c0_31], %86 {strides = array<i32>} : memref<2x8x32xf32, #tpu.memory_space<vmem>>, vector<2x1x32xf32>,
    %cst_32 = arith.constant dense<0.000000e+00> : vector<2x96xf32>
    %87 = tpu.matmul %83, %8, %cst_32 {dimension_numbers = #tpu.dot_dimension_numbers<[1], [0], [0], [1], [0, 0, 1, 1], [], []>} : vector<2x32xf32>, vector<32x96xf32>, vector<2x96xf32> -> vector<2x96xf32>
    %88 = vector.extract_strided_slice %7 {offsets = [0, 2, 0], sizes = [2, 1, 96], strides = [1, 1, 1]} : vector<2x8x96xf32> to vector<2x1x96xf32>
    %89 = vector.shape_cast %88 : vector<2x1x96xf32> to vector<2x96xf32>
    %90 = vector.extract_strided_slice %89 {offsets = [0, 0], sizes = [2, 32], strides = [1, 1]} : vector<2x96xf32> to vector<2x32xf32>
    %91 = vector.extract_strided_slice %87 {offsets = [0, 0], sizes = [2, 32], strides = [1, 1]} : vector<2x96xf32> to vector<2x32xf32>
    %92 = arith.addf %90, %91 : vector<2x32xf32>
    %cst_33 = arith.constant 5.000000e-01 : f32
    %93 = vector.broadcast %cst_33 : f32 to vector<2x32xf32>
    %94 = arith.mulf %93, %92 : vector<2x32xf32>
    %95 = math.tanh %94 : vector<2x32xf32>
    %cst_34 = arith.constant 1.000000e+00 : f32
    %96 = vector.broadcast %cst_34 : f32 to vector<2x32xf32>
    %97 = arith.addf %95, %96 : vector<2x32xf32>
    %cst_35 = arith.constant 5.000000e-01 : f32
    %98 = vector.broadcast %cst_35 : f32 to vector<2x32xf32>
    %99 = arith.mulf %98, %97 : vector<2x32xf32>
    %100 = vector.extract_strided_slice %89 {offsets = [0, 32], sizes = [2, 32], strides = [1, 1]} : vector<2x96xf32> to vector<2x32xf32>
    %101 = vector.extract_strided_slice %87 {offsets = [0, 32], sizes = [2, 32], strides = [1, 1]} : vector<2x96xf32> to vector<2x32xf32>
    %102 = arith.addf %100, %101 : vector<2x32xf32>
    %cst_36 = arith.constant 5.000000e-01 : f32
    %103 = vector.broadcast %cst_36 : f32 to vector<2x32xf32>
    %104 = arith.mulf %103, %102 : vector<2x32xf32>
    %105 = math.tanh %104 : vector<2x32xf32>
    %cst_37 = arith.constant 1.000000e+00 : f32
    %106 = vector.broadcast %cst_37 : f32 to vector<2x32xf32>
    %107 = arith.addf %105, %106 : vector<2x32xf32>
    %cst_38 = arith.constant 5.000000e-01 : f32
    %108 = vector.broadcast %cst_38 : f32 to vector<2x32xf32>
    %109 = arith.mulf %108, %107 : vector<2x32xf32>
    %110 = vector.extract_strided_slice %89 {offsets = [0, 64], sizes = [2, 32], strides = [1, 1]} : vector<2x96xf32> to vector<2x32xf32>
    %111 = vector.extract_strided_slice %87 {offsets = [0, 64], sizes = [2, 32], strides = [1, 1]} : vector<2x96xf32> to vector<2x32xf32>
    %112 = vector.broadcast %9 : vector<1x32xf32> to vector<2x32xf32>
    %113 = arith.addf %111, %112 : vector<2x32xf32>
    %114 = arith.mulf %99, %113 : vector<2x32xf32>
    %115 = arith.addf %110, %114 : vector<2x32xf32>
    %116 = math.tanh %115 : vector<2x32xf32>
    %cst_39 = arith.constant 1.000000e+00 : f32
    %117 = vector.broadcast %cst_39 : f32 to vector<2x32xf32>
    %118 = arith.subf %117, %109 : vector<2x32xf32>
    %119 = arith.mulf %118, %116 : vector<2x32xf32>
    %120 = arith.mulf %109, %83 : vector<2x32xf32>
    %121 = arith.addf %119, %120 : vector<2x32xf32>
    %c0_40 = arith.constant 0 : index
    %c2 = arith.constant 2 : index
    %c0_41 = arith.constant 0 : index
    %122 = vector.load %arg16[%c0_40, %c2, %c0_41] : memref<2x8x32xf32, #tpu.memory_space<vmem>>, vector<2x1x32xf32>
    %123 = vector.shape_cast %122 : vector<2x1x32xf32> to vector<2x32xf32>
    %124 = vector.shape_cast %121 : vector<2x32xf32> to vector<2x1x32xf32>
    tpu.vector_store %arg16[%c0_40, %c2, %c0_41], %124 {strides = array<i32>} : memref<2x8x32xf32, #tpu.memory_space<vmem>>, vector<2x1x32xf32>,
    %cst_42 = arith.constant dense<0.000000e+00> : vector<2x96xf32>
    %125 = tpu.matmul %121, %8, %cst_42 {dimension_numbers = #tpu.dot_dimension_numbers<[1], [0], [0], [1], [0, 0, 1, 1], [], []>} : vector<2x32xf32>, vector<32x96xf32>, vector<2x96xf32> -> vector<2x96xf32>
    %126 = vector.extract_strided_slice %7 {offsets = [0, 3, 0], sizes = [2, 1, 96], strides = [1, 1, 1]} : vector<2x8x96xf32> to vector<2x1x96xf32>
    %127 = vector.shape_cast %126 : vector<2x1x96xf32> to vector<2x96xf32>
    %128 = vector.extract_strided_slice %127 {offsets = [0, 0], sizes = [2, 32], strides = [1, 1]} : vector<2x96xf32> to vector<2x32xf32>
    %129 = vector.extract_strided_slice %125 {offsets = [0, 0], sizes = [2, 32], strides = [1, 1]} : vector<2x96xf32> to vector<2x32xf32>
    %130 = arith.addf %128, %129 : vector<2x32xf32>
    %cst_43 = arith.constant 5.000000e-01 : f32
    %131 = vector.broadcast %cst_43 : f32 to vector<2x32xf32>
    %132 = arith.mulf %131, %130 : vector<2x32xf32>
    %133 = math.tanh %132 : vector<2x32xf32>
    %cst_44 = arith.constant 1.000000e+00 : f32
    %134 = vector.broadcast %cst_44 : f32 to vector<2x32xf32>
    %135 = arith.addf %133, %134 : vector<2x32xf32>
    %cst_45 = arith.constant 5.000000e-01 : f32
    %136 = vector.broadcast %cst_45 : f32 to vector<2x32xf32>
    %137 = arith.mulf %136, %135 : vector<2x32xf32>
    %138 = vector.extract_strided_slice %127 {offsets = [0, 32], sizes = [2, 32], strides = [1, 1]} : vector<2x96xf32> to vector<2x32xf32>
    %139 = vector.extract_strided_slice %125 {offsets = [0, 32], sizes = [2, 32], strides = [1, 1]} : vector<2x96xf32> to vector<2x32xf32>
    %140 = arith.addf %138, %139 : vector<2x32xf32>
    %cst_46 = arith.constant 5.000000e-01 : f32
    %141 = vector.broadcast %cst_46 : f32 to vector<2x32xf32>
    %142 = arith.mulf %141, %140 : vector<2x32xf32>
    %143 = math.tanh %142 : vector<2x32xf32>
    %cst_47 = arith.constant 1.000000e+00 : f32
    %144 = vector.broadcast %cst_47 : f32 to vector<2x32xf32>
    %145 = arith.addf %143, %144 : vector<2x32xf32>
    %cst_48 = arith.constant 5.000000e-01 : f32
    %146 = vector.broadcast %cst_48 : f32 to vector<2x32xf32>
    %147 = arith.mulf %146, %145 : vector<2x32xf32>
    %148 = vector.extract_strided_slice %127 {offsets = [0, 64], sizes = [2, 32], strides = [1, 1]} : vector<2x96xf32> to vector<2x32xf32>
    %149 = vector.extract_strided_slice %125 {offsets = [0, 64], sizes = [2, 32], strides = [1, 1]} : vector<2x96xf32> to vector<2x32xf32>
    %150 = vector.broadcast %9 : vector<1x32xf32> to vector<2x32xf32>
    %151 = arith.addf %149, %150 : vector<2x32xf32>
    %152 = arith.mulf %137, %151 : vector<2x32xf32>
    %153 = arith.addf %148, %152 : vector<2x32xf32>
    %154 = math.tanh %153 : vector<2x32xf32>
    %cst_49 = arith.constant 1.000000e+00 : f32
    %155 = vector.broadcast %cst_49 : f32 to vector<2x32xf32>
    %156 = arith.subf %155, %147 : vector<2x32xf32>
    %157 = arith.mulf %156, %154 : vector<2x32xf32>
    %158 = arith.mulf %147, %121 : vector<2x32xf32>
    %159 = arith.addf %157, %158 : vector<2x32xf32>
    %c0_50 = arith.constant 0 : index
    %c3 = arith.constant 3 : index
    %c0_51 = arith.constant 0 : index
    %160 = vector.load %arg16[%c0_50, %c3, %c0_51] : memref<2x8x32xf32, #tpu.memory_space<vmem>>, vector<2x1x32xf32>
    %161 = vector.shape_cast %160 : vector<2x1x32xf32> to vector<2x32xf32>
    %162 = vector.shape_cast %159 : vector<2x32xf32> to vector<2x1x32xf32>
    tpu.vector_store %arg16[%c0_50, %c3, %c0_51], %162 {strides = array<i32>} : memref<2x8x32xf32, #tpu.memory_space<vmem>>, vector<2x1x32xf32>,
    %cst_52 = arith.constant dense<0.000000e+00> : vector<2x96xf32>
    %163 = tpu.matmul %159, %8, %cst_52 {dimension_numbers = #tpu.dot_dimension_numbers<[1], [0], [0], [1], [0, 0, 1, 1], [], []>} : vector<2x32xf32>, vector<32x96xf32>, vector<2x96xf32> -> vector<2x96xf32>
    %164 = vector.extract_strided_slice %7 {offsets = [0, 4, 0], sizes = [2, 1, 96], strides = [1, 1, 1]} : vector<2x8x96xf32> to vector<2x1x96xf32>
    %165 = vector.shape_cast %164 : vector<2x1x96xf32> to vector<2x96xf32>
    %166 = vector.extract_strided_slice %165 {offsets = [0, 0], sizes = [2, 32], strides = [1, 1]} : vector<2x96xf32> to vector<2x32xf32>
    %167 = vector.extract_strided_slice %163 {offsets = [0, 0], sizes = [2, 32], strides = [1, 1]} : vector<2x96xf32> to vector<2x32xf32>
    %168 = arith.addf %166, %167 : vector<2x32xf32>
    %cst_53 = arith.constant 5.000000e-01 : f32
    %169 = vector.broadcast %cst_53 : f32 to vector<2x32xf32>
    %170 = arith.mulf %169, %168 : vector<2x32xf32>
    %171 = math.tanh %170 : vector<2x32xf32>
    %cst_54 = arith.constant 1.000000e+00 : f32
    %172 = vector.broadcast %cst_54 : f32 to vector<2x32xf32>
    %173 = arith.addf %171, %172 : vector<2x32xf32>
    %cst_55 = arith.constant 5.000000e-01 : f32
    %174 = vector.broadcast %cst_55 : f32 to vector<2x32xf32>
    %175 = arith.mulf %174, %173 : vector<2x32xf32>
    %176 = vector.extract_strided_slice %165 {offsets = [0, 32], sizes = [2, 32], strides = [1, 1]} : vector<2x96xf32> to vector<2x32xf32>
    %177 = vector.extract_strided_slice %163 {offsets = [0, 32], sizes = [2, 32], strides = [1, 1]} : vector<2x96xf32> to vector<2x32xf32>
    %178 = arith.addf %176, %177 : vector<2x32xf32>
    %cst_56 = arith.constant 5.000000e-01 : f32
    %179 = vector.broadcast %cst_56 : f32 to vector<2x32xf32>
    %180 = arith.mulf %179, %178 : vector<2x32xf32>
    %181 = math.tanh %180 : vector<2x32xf32>
    %cst_57 = arith.constant 1.000000e+00 : f32
    %182 = vector.broadcast %cst_57 : f32 to vector<2x32xf32>
    %183 = arith.addf %181, %182 : vector<2x32xf32>
    %cst_58 = arith.constant 5.000000e-01 : f32
    %184 = vector.broadcast %cst_58 : f32 to vector<2x32xf32>
    %185 = arith.mulf %184, %183 : vector<2x32xf32>
    %186 = vector.extract_strided_slice %165 {offsets = [0, 64], sizes = [2, 32], strides = [1, 1]} : vector<2x96xf32> to vector<2x32xf32>
    %187 = vector.extract_strided_slice %163 {offsets = [0, 64], sizes = [2, 32], strides = [1, 1]} : vector<2x96xf32> to vector<2x32xf32>
    %188 = vector.broadcast %9 : vector<1x32xf32> to vector<2x32xf32>
    %189 = arith.addf %187, %188 : vector<2x32xf32>
    %190 = arith.mulf %175, %189 : vector<2x32xf32>
    %191 = arith.addf %186, %190 : vector<2x32xf32>
    %192 = math.tanh %191 : vector<2x32xf32>
    %cst_59 = arith.constant 1.000000e+00 : f32
    %193 = vector.broadcast %cst_59 : f32 to vector<2x32xf32>
    %194 = arith.subf %193, %185 : vector<2x32xf32>
    %195 = arith.mulf %194, %192 : vector<2x32xf32>
    %196 = arith.mulf %185, %159 : vector<2x32xf32>
    %197 = arith.addf %195, %196 : vector<2x32xf32>
    %c0_60 = arith.constant 0 : index
    %c4 = arith.constant 4 : index
    %c0_61 = arith.constant 0 : index
    %198 = vector.load %arg16[%c0_60, %c4, %c0_61] : memref<2x8x32xf32, #tpu.memory_space<vmem>>, vector<2x1x32xf32>
    %199 = vector.shape_cast %198 : vector<2x1x32xf32> to vector<2x32xf32>
    %200 = vector.shape_cast %197 : vector<2x32xf32> to vector<2x1x32xf32>
    tpu.vector_store %arg16[%c0_60, %c4, %c0_61], %200 {strides = array<i32>} : memref<2x8x32xf32, #tpu.memory_space<vmem>>, vector<2x1x32xf32>,
    %cst_62 = arith.constant dense<0.000000e+00> : vector<2x96xf32>
    %201 = tpu.matmul %197, %8, %cst_62 {dimension_numbers = #tpu.dot_dimension_numbers<[1], [0], [0], [1], [0, 0, 1, 1], [], []>} : vector<2x32xf32>, vector<32x96xf32>, vector<2x96xf32> -> vector<2x96xf32>
    %202 = vector.extract_strided_slice %7 {offsets = [0, 5, 0], sizes = [2, 1, 96], strides = [1, 1, 1]} : vector<2x8x96xf32> to vector<2x1x96xf32>
    %203 = vector.shape_cast %202 : vector<2x1x96xf32> to vector<2x96xf32>
    %204 = vector.extract_strided_slice %203 {offsets = [0, 0], sizes = [2, 32], strides = [1, 1]} : vector<2x96xf32> to vector<2x32xf32>
    %205 = vector.extract_strided_slice %201 {offsets = [0, 0], sizes = [2, 32], strides = [1, 1]} : vector<2x96xf32> to vector<2x32xf32>
    %206 = arith.addf %204, %205 : vector<2x32xf32>
    %cst_63 = arith.constant 5.000000e-01 : f32
    %207 = vector.broadcast %cst_63 : f32 to vector<2x32xf32>
    %208 = arith.mulf %207, %206 : vector<2x32xf32>
    %209 = math.tanh %208 : vector<2x32xf32>
    %cst_64 = arith.constant 1.000000e+00 : f32
    %210 = vector.broadcast %cst_64 : f32 to vector<2x32xf32>
    %211 = arith.addf %209, %210 : vector<2x32xf32>
    %cst_65 = arith.constant 5.000000e-01 : f32
    %212 = vector.broadcast %cst_65 : f32 to vector<2x32xf32>
    %213 = arith.mulf %212, %211 : vector<2x32xf32>
    %214 = vector.extract_strided_slice %203 {offsets = [0, 32], sizes = [2, 32], strides = [1, 1]} : vector<2x96xf32> to vector<2x32xf32>
    %215 = vector.extract_strided_slice %201 {offsets = [0, 32], sizes = [2, 32], strides = [1, 1]} : vector<2x96xf32> to vector<2x32xf32>
    %216 = arith.addf %214, %215 : vector<2x32xf32>
    %cst_66 = arith.constant 5.000000e-01 : f32
    %217 = vector.broadcast %cst_66 : f32 to vector<2x32xf32>
    %218 = arith.mulf %217, %216 : vector<2x32xf32>
    %219 = math.tanh %218 : vector<2x32xf32>
    %cst_67 = arith.constant 1.000000e+00 : f32
    %220 = vector.broadcast %cst_67 : f32 to vector<2x32xf32>
    %221 = arith.addf %219, %220 : vector<2x32xf32>
    %cst_68 = arith.constant 5.000000e-01 : f32
    %222 = vector.broadcast %cst_68 : f32 to vector<2x32xf32>
    %223 = arith.mulf %222, %221 : vector<2x32xf32>
    %224 = vector.extract_strided_slice %203 {offsets = [0, 64], sizes = [2, 32], strides = [1, 1]} : vector<2x96xf32> to vector<2x32xf32>
    %225 = vector.extract_strided_slice %201 {offsets = [0, 64], sizes = [2, 32], strides = [1, 1]} : vector<2x96xf32> to vector<2x32xf32>
    %226 = vector.broadcast %9 : vector<1x32xf32> to vector<2x32xf32>
    %227 = arith.addf %225, %226 : vector<2x32xf32>
    %228 = arith.mulf %213, %227 : vector<2x32xf32>
    %229 = arith.addf %224, %228 : vector<2x32xf32>
    %230 = math.tanh %229 : vector<2x32xf32>
    %cst_69 = arith.constant 1.000000e+00 : f32
    %231 = vector.broadcast %cst_69 : f32 to vector<2x32xf32>
    %232 = arith.subf %231, %223 : vector<2x32xf32>
    %233 = arith.mulf %232, %230 : vector<2x32xf32>
    %234 = arith.mulf %223, %197 : vector<2x32xf32>
    %235 = arith.addf %233, %234 : vector<2x32xf32>
    %c0_70 = arith.constant 0 : index
    %c5 = arith.constant 5 : index
    %c0_71 = arith.constant 0 : index
    %236 = vector.load %arg16[%c0_70, %c5, %c0_71] : memref<2x8x32xf32, #tpu.memory_space<vmem>>, vector<2x1x32xf32>
    %237 = vector.shape_cast %236 : vector<2x1x32xf32> to vector<2x32xf32>
    %238 = vector.shape_cast %235 : vector<2x32xf32> to vector<2x1x32xf32>
    tpu.vector_store %arg16[%c0_70, %c5, %c0_71], %238 {strides = array<i32>} : memref<2x8x32xf32, #tpu.memory_space<vmem>>, vector<2x1x32xf32>,
    %cst_72 = arith.constant dense<0.000000e+00> : vector<2x96xf32>
    %239 = tpu.matmul %235, %8, %cst_72 {dimension_numbers = #tpu.dot_dimension_numbers<[1], [0], [0], [1], [0, 0, 1, 1], [], []>} : vector<2x32xf32>, vector<32x96xf32>, vector<2x96xf32> -> vector<2x96xf32>
    %240 = vector.extract_strided_slice %7 {offsets = [0, 6, 0], sizes = [2, 1, 96], strides = [1, 1, 1]} : vector<2x8x96xf32> to vector<2x1x96xf32>
    %241 = vector.shape_cast %240 : vector<2x1x96xf32> to vector<2x96xf32>
    %242 = vector.extract_strided_slice %241 {offsets = [0, 0], sizes = [2, 32], strides = [1, 1]} : vector<2x96xf32> to vector<2x32xf32>
    %243 = vector.extract_strided_slice %239 {offsets = [0, 0], sizes = [2, 32], strides = [1, 1]} : vector<2x96xf32> to vector<2x32xf32>
    %244 = arith.addf %242, %243 : vector<2x32xf32>
    %cst_73 = arith.constant 5.000000e-01 : f32
    %245 = vector.broadcast %cst_73 : f32 to vector<2x32xf32>
    %246 = arith.mulf %245, %244 : vector<2x32xf32>
    %247 = math.tanh %246 : vector<2x32xf32>
    %cst_74 = arith.constant 1.000000e+00 : f32
    %248 = vector.broadcast %cst_74 : f32 to vector<2x32xf32>
    %249 = arith.addf %247, %248 : vector<2x32xf32>
    %cst_75 = arith.constant 5.000000e-01 : f32
    %250 = vector.broadcast %cst_75 : f32 to vector<2x32xf32>
    %251 = arith.mulf %250, %249 : vector<2x32xf32>
    %252 = vector.extract_strided_slice %241 {offsets = [0, 32], sizes = [2, 32], strides = [1, 1]} : vector<2x96xf32> to vector<2x32xf32>
    %253 = vector.extract_strided_slice %239 {offsets = [0, 32], sizes = [2, 32], strides = [1, 1]} : vector<2x96xf32> to vector<2x32xf32>
    %254 = arith.addf %252, %253 : vector<2x32xf32>
    %cst_76 = arith.constant 5.000000e-01 : f32
    %255 = vector.broadcast %cst_76 : f32 to vector<2x32xf32>
    %256 = arith.mulf %255, %254 : vector<2x32xf32>
    %257 = math.tanh %256 : vector<2x32xf32>
    %cst_77 = arith.constant 1.000000e+00 : f32
    %258 = vector.broadcast %cst_77 : f32 to vector<2x32xf32>
    %259 = arith.addf %257, %258 : vector<2x32xf32>
    %cst_78 = arith.constant 5.000000e-01 : f32
    %260 = vector.broadcast %cst_78 : f32 to vector<2x32xf32>
    %261 = arith.mulf %260, %259 : vector<2x32xf32>
    %262 = vector.extract_strided_slice %241 {offsets = [0, 64], sizes = [2, 32], strides = [1, 1]} : vector<2x96xf32> to vector<2x32xf32>
    %263 = vector.extract_strided_slice %239 {offsets = [0, 64], sizes = [2, 32], strides = [1, 1]} : vector<2x96xf32> to vector<2x32xf32>
    %264 = vector.broadcast %9 : vector<1x32xf32> to vector<2x32xf32>
    %265 = arith.addf %263, %264 : vector<2x32xf32>
    %266 = arith.mulf %251, %265 : vector<2x32xf32>
    %267 = arith.addf %262, %266 : vector<2x32xf32>
    %268 = math.tanh %267 : vector<2x32xf32>
    %cst_79 = arith.constant 1.000000e+00 : f32
    %269 = vector.broadcast %cst_79 : f32 to vector<2x32xf32>
    %270 = arith.subf %269, %261 : vector<2x32xf32>
    %271 = arith.mulf %270, %268 : vector<2x32xf32>
    %272 = arith.mulf %261, %235 : vector<2x32xf32>
    %273 = arith.addf %271, %272 : vector<2x32xf32>
    %c0_80 = arith.constant 0 : index
    %c6 = arith.constant 6 : index
    %c0_81 = arith.constant 0 : index
    %274 = vector.load %arg16[%c0_80, %c6, %c0_81] : memref<2x8x32xf32, #tpu.memory_space<vmem>>, vector<2x1x32xf32>
    %275 = vector.shape_cast %274 : vector<2x1x32xf32> to vector<2x32xf32>
    %276 = vector.shape_cast %273 : vector<2x32xf32> to vector<2x1x32xf32>
    tpu.vector_store %arg16[%c0_80, %c6, %c0_81], %276 {strides = array<i32>} : memref<2x8x32xf32, #tpu.memory_space<vmem>>, vector<2x1x32xf32>,
    %cst_82 = arith.constant dense<0.000000e+00> : vector<2x96xf32>
    %277 = tpu.matmul %273, %8, %cst_82 {dimension_numbers = #tpu.dot_dimension_numbers<[1], [0], [0], [1], [0, 0, 1, 1], [], []>} : vector<2x32xf32>, vector<32x96xf32>, vector<2x96xf32> -> vector<2x96xf32>
    %278 = vector.extract_strided_slice %7 {offsets = [0, 7, 0], sizes = [2, 1, 96], strides = [1, 1, 1]} : vector<2x8x96xf32> to vector<2x1x96xf32>
    %279 = vector.shape_cast %278 : vector<2x1x96xf32> to vector<2x96xf32>
    %280 = vector.extract_strided_slice %279 {offsets = [0, 0], sizes = [2, 32], strides = [1, 1]} : vector<2x96xf32> to vector<2x32xf32>
    %281 = vector.extract_strided_slice %277 {offsets = [0, 0], sizes = [2, 32], strides = [1, 1]} : vector<2x96xf32> to vector<2x32xf32>
    %282 = arith.addf %280, %281 : vector<2x32xf32>
    %cst_83 = arith.constant 5.000000e-01 : f32
    %283 = vector.broadcast %cst_83 : f32 to vector<2x32xf32>
    %284 = arith.mulf %283, %282 : vector<2x32xf32>
    %285 = math.tanh %284 : vector<2x32xf32>
    %cst_84 = arith.constant 1.000000e+00 : f32
    %286 = vector.broadcast %cst_84 : f32 to vector<2x32xf32>
    %287 = arith.addf %285, %286 : vector<2x32xf32>
    %cst_85 = arith.constant 5.000000e-01 : f32
    %288 = vector.broadcast %cst_85 : f32 to vector<2x32xf32>
    %289 = arith.mulf %288, %287 : vector<2x32xf32>
    %290 = vector.extract_strided_slice %279 {offsets = [0, 32], sizes = [2, 32], strides = [1, 1]} : vector<2x96xf32> to vector<2x32xf32>
    %291 = vector.extract_strided_slice %277 {offsets = [0, 32], sizes = [2, 32], strides = [1, 1]} : vector<2x96xf32> to vector<2x32xf32>
    %292 = arith.addf %290, %291 : vector<2x32xf32>
    %cst_86 = arith.constant 5.000000e-01 : f32
    %293 = vector.broadcast %cst_86 : f32 to vector<2x32xf32>
    %294 = arith.mulf %293, %292 : vector<2x32xf32>
    %295 = math.tanh %294 : vector<2x32xf32>
    %cst_87 = arith.constant 1.000000e+00 : f32
    %296 = vector.broadcast %cst_87 : f32 to vector<2x32xf32>
    %297 = arith.addf %295, %296 : vector<2x32xf32>
    %cst_88 = arith.constant 5.000000e-01 : f32
    %298 = vector.broadcast %cst_88 : f32 to vector<2x32xf32>
    %299 = arith.mulf %298, %297 : vector<2x32xf32>
    %300 = vector.extract_strided_slice %279 {offsets = [0, 64], sizes = [2, 32], strides = [1, 1]} : vector<2x96xf32> to vector<2x32xf32>
    %301 = vector.extract_strided_slice %277 {offsets = [0, 64], sizes = [2, 32], strides = [1, 1]} : vector<2x96xf32> to vector<2x32xf32>
    %302 = vector.broadcast %9 : vector<1x32xf32> to vector<2x32xf32>
    %303 = arith.addf %301, %302 : vector<2x32xf32>
    %304 = arith.mulf %289, %303 : vector<2x32xf32>
    %305 = arith.addf %300, %304 : vector<2x32xf32>
    %306 = math.tanh %305 : vector<2x32xf32>
    %cst_89 = arith.constant 1.000000e+00 : f32
    %307 = vector.broadcast %cst_89 : f32 to vector<2x32xf32>
    %308 = arith.subf %307, %299 : vector<2x32xf32>
    %309 = arith.mulf %308, %306 : vector<2x32xf32>
    %310 = arith.mulf %299, %273 : vector<2x32xf32>
    %311 = arith.addf %309, %310 : vector<2x32xf32>
    %c0_90 = arith.constant 0 : index
    %c7 = arith.constant 7 : index
    %c0_91 = arith.constant 0 : index
    %312 = vector.load %arg16[%c0_90, %c7, %c0_91] : memref<2x8x32xf32, #tpu.memory_space<vmem>>, vector<2x1x32xf32>
    %313 = vector.shape_cast %312 : vector<2x1x32xf32> to vector<2x32xf32>
    %314 = vector.shape_cast %311 : vector<2x32xf32> to vector<2x1x32xf32>
    tpu.vector_store %arg16[%c0_90, %c7, %c0_91], %314 {strides = array<i32>} : memref<2x8x32xf32, #tpu.memory_space<vmem>>, vector<2x1x32xf32>,
    %c0_92 = arith.constant 0 : index
    %c0_93 = arith.constant 0 : index
    %c0_94 = arith.constant 0 : index
    %315 = vector.load %arg16[%c0_92, %c0_93, %c0_94] : memref<2x8x32xf32, #tpu.memory_space<vmem>>, vector<2x8x32xf32>
    %316 = vector.shape_cast %315 : vector<2x8x32xf32> to vector<16x32xf32>
    %317 = arith.mulf %316, %316 : vector<16x32xf32>
    %cst_95 = arith.constant dense<0.000000e+00> : vector<16xf32>
    %318 = vector.multi_reduction <add>, %317, %cst_95 [1] : vector<16x32xf32> to vector<16xf32>
    %319 = vector.shape_cast %318 : vector<16xf32> to vector<16x1xf32>
    %cst_96 = arith.constant 1.000000e-24 : f32
    %320 = vector.broadcast %cst_96 : f32 to vector<16x1xf32>
    %321 = arith.maximumf %319, %320 : vector<16x1xf32>
    %322 = math.rsqrt %321 : vector<16x1xf32>
    %323 = vector.broadcast %322 : vector<16x1xf32> to vector<16x32xf32>
    %324 = arith.mulf %316, %323 : vector<16x32xf32>
    %c0_97 = arith.constant 0 : index
    %c0_98 = arith.constant 0 : index
    %325 = vector.load %arg6[%c0_97, %c0_98] : memref<32x32xf32, #tpu.memory_space<vmem>>, vector<32x32xf32>
    %cst_99 = arith.constant dense<0.000000e+00> : vector<16x32xf32>
    %326 = tpu.matmul %324, %325, %cst_99 {dimension_numbers = #tpu.dot_dimension_numbers<[1], [0], [0], [1], [0, 0, 1, 1], [], []>} : vector<16x32xf32>, vector<32x32xf32>, vector<16x32xf32> -> vector<16x32xf32>
    %c0_100 = arith.constant 0 : index
    %c0_101 = arith.constant 0 : index
    %327 = vector.load %arg7[%c0_100, %c0_101] : memref<1x32xf32, #tpu.memory_space<vmem>>, vector<1x32xf32>
    %328 = vector.broadcast %327 : vector<1x32xf32> to vector<16x32xf32>
    %329 = arith.addf %326, %328 : vector<16x32xf32>
    %330 = math.tanh %329 : vector<16x32xf32>
    %c0_102 = arith.constant 0 : index
    %c0_103 = arith.constant 0 : index
    %331 = vector.load %arg8[%c0_102, %c0_103] : memref<32x32xf32, #tpu.memory_space<vmem>>, vector<32x32xf32>
    %cst_104 = arith.constant dense<0.000000e+00> : vector<16x32xf32>
    %332 = tpu.matmul %330, %331, %cst_104 {dimension_numbers = #tpu.dot_dimension_numbers<[1], [0], [0], [1], [0, 0, 1, 1], [], []>} : vector<16x32xf32>, vector<32x32xf32>, vector<16x32xf32> -> vector<16x32xf32>
    %c0_105 = arith.constant 0 : index
    %c0_106 = arith.constant 0 : index
    %333 = vector.load %arg9[%c0_105, %c0_106] : memref<1x32xf32, #tpu.memory_space<vmem>>, vector<1x32xf32>
    %334 = vector.broadcast %333 : vector<1x32xf32> to vector<16x32xf32>
    %335 = arith.addf %332, %334 : vector<16x32xf32>
    %336 = vector.extract_strided_slice %335 {offsets = [0, 0], sizes = [16, 16], strides = [1, 1]} : vector<16x32xf32> to vector<16x16xf32>
    %337 = vector.extract_strided_slice %335 {offsets = [0, 16], sizes = [16, 16], strides = [1, 1]} : vector<16x32xf32> to vector<16x16xf32>
    %cst_107 = arith.constant 5.000000e-01 : f32
    %338 = vector.broadcast %cst_107 : f32 to vector<16x16xf32>
    %339 = arith.mulf %338, %337 : vector<16x16xf32>
    %340 = math.exp %339 : vector<16x16xf32>
    %c0_108 = arith.constant 0 : index
    %c0_109 = arith.constant 0 : index
    %c0_110 = arith.constant 0 : index
    %341 = vector.load %arg1[%c0_108, %c0_109, %c0_110] : memref<2x8x16xf32, #tpu.memory_space<vmem>>, vector<2x8x16xf32>
    %342 = vector.shape_cast %341 : vector<2x8x16xf32> to vector<16x16xf32>
    %343 = arith.mulf %340, %342 : vector<16x16xf32>
    %344 = arith.addf %336, %343 : vector<16x16xf32>
    %c0_111 = arith.constant 0 : index
    %c0_112 = arith.constant 0 : index
    %345 = vector.load %arg10[%c0_111, %c0_112] : memref<16x32xf32, #tpu.memory_space<vmem>>, vector<16x32xf32>
    %cst_113 = arith.constant dense<0.000000e+00> : vector<16x32xf32>
    %346 = tpu.matmul %344, %345, %cst_113 {dimension_numbers = #tpu.dot_dimension_numbers<[1], [0], [0], [1], [0, 0, 1, 1], [], []>} : vector<16x16xf32>, vector<16x32xf32>, vector<16x32xf32> -> vector<16x32xf32>
    %c0_114 = arith.constant 0 : index
    %c0_115 = arith.constant 0 : index
    %347 = vector.load %arg11[%c0_114, %c0_115] : memref<1x32xf32, #tpu.memory_space<vmem>>, vector<1x32xf32>
    %348 = vector.broadcast %347 : vector<1x32xf32> to vector<16x32xf32>
    %349 = arith.addf %346, %348 : vector<16x32xf32>
    %350 = math.tanh %349 : vector<16x32xf32>
    %c0_116 = arith.constant 0 : index
    %c0_117 = arith.constant 0 : index
    %351 = vector.load %arg12[%c0_116, %c0_117] : memref<32x256xf32, #tpu.memory_space<vmem>>, vector<32x256xf32>
    %cst_118 = arith.constant dense<0.000000e+00> : vector<16x256xf32>
    %352 = tpu.matmul %350, %351, %cst_118 {dimension_numbers = #tpu.dot_dimension_numbers<[1], [0], [0], [1], [0, 0, 1, 1], [], []>} : vector<16x32xf32>, vector<32x256xf32>, vector<16x256xf32> -> vector<16x256xf32>
    %c0_119 = arith.constant 0 : index
    %c0_120 = arith.constant 0 : index
    %353 = vector.load %arg13[%c0_119, %c0_120] : memref<1x256xf32, #tpu.memory_space<vmem>>, vector<1x256xf32>
    %354 = vector.broadcast %353 : vector<1x256xf32> to vector<16x256xf32>
    %355 = arith.addf %352, %354 : vector<16x256xf32>
    %356 = vector.shape_cast %355 : vector<16x256xf32> to vector<2x8x256xf32>
    %c0_121 = arith.constant 0 : index
    %c0_122 = arith.constant 0 : index
    %c0_123 = arith.constant 0 : index
    %357 = vector.load %arg14[%c0_121, %c0_122, %c0_123] : memref<2x8x256xf32, #tpu.memory_space<vmem>>, vector<2x8x256xf32>
    tpu.vector_store %arg14[%c0_121, %c0_122, %c0_123], %356 {strides = array<i32>} : memref<2x8x256xf32, #tpu.memory_space<vmem>>, vector<2x8x256xf32>,
    %358 = vector.shape_cast %335 : vector<16x32xf32> to vector<2x8x32xf32>
    %c0_124 = arith.constant 0 : index
    %c0_125 = arith.constant 0 : index
    %c0_126 = arith.constant 0 : index
    %359 = vector.load %arg15[%c0_124, %c0_125, %c0_126] : memref<2x8x32xf32, #tpu.memory_space<vmem>>, vector<2x8x32xf32>
    tpu.vector_store %arg15[%c0_124, %c0_125, %c0_126], %358 {strides = array<i32>} : memref<2x8x32xf32, #tpu.memory_space<vmem>>, vector<2x8x32xf32>,
    return
  }
}

</mosaic_0001>

<llo_original>
// kernel: seqvae_forward_pallas.1
$region0: #{seqvae_forward_pallas.1}
  #allocation0 [shape = 'u32[]', space=smem, size = 0x4, offset = 0x4, fixed_abs, tag = 'smem constant byte address 0x4 - core index']
  #allocation1 [shape = 'u32[144,128]{1,0:T(1,128)}', space=vmem, size = 0x12000, scoped, tag = 'internal scratch']
  #allocation2 [shape = 'f32[2,8,32]{2,1,0:T(8,128)}', space=vmem, size = 0x2000, scoped, tag = 'scratch operand']
  %s0 = inlined_call_operand.vmem [shape: f32[2,8,16], index: 0, kind: input, shape index: {}]
  %s1 = inlined_call_operand.vmem [shape: f32[2,8,16], index: 1, kind: input, shape index: {}]
  %s2 = inlined_call_operand.vmem [shape: f32[16,96], index: 2, kind: input, shape index: {}]
  %s3 = inlined_call_operand.vmem [shape: f32[32,96], index: 3, kind: input, shape index: {}]
  %s4 = inlined_call_operand.vmem [shape: f32[1,96], index: 4, kind: input, shape index: {}]
  %s5 = inlined_call_operand.vmem [shape: f32[1,32], index: 5, kind: input, shape index: {}]
  %s6 = inlined_call_operand.vmem [shape: f32[32,32], index: 6, kind: input, shape index: {}]
  %s7 = inlined_call_operand.vmem [shape: f32[1,32], index: 7, kind: input, shape index: {}]
  %s8 = inlined_call_operand.vmem [shape: f32[32,32], index: 8, kind: input, shape index: {}]
  %s9 = inlined_call_operand.vmem [shape: f32[1,32], index: 9, kind: input, shape index: {}]
  %s10 = inlined_call_operand.vmem [shape: f32[16,32], index: 10, kind: input, shape index: {}]
  %s11 = inlined_call_operand.vmem [shape: f32[1,32], index: 11, kind: input, shape index: {}]
  %s12 = inlined_call_operand.vmem [shape: f32[32,256], index: 12, kind: input, shape index: {}]
  %s13 = inlined_call_operand.vmem [shape: f32[1,256], index: 13, kind: input, shape index: {}]
  %s14 = inlined_call_operand.hbm [shape: f32[2,8,256], index: 14, kind: output, shape index: {0}]
  %s15 = inlined_call_operand.vmem [shape: f32[2,8,32], index: 15, kind: output, shape index: {1}]
  %16 = xla_tuple %s14, %s15
  %s17 = sld [smem:[#allocation0]]
  $region74: #{seqvae_forward_pallas.1} parent=0
    _
  %s19 = ssub.s32 1, %s17
  %s20 = scalar_select 0, %s19, %s17
  $region1: #{seqvae_forward_pallas.1} parent=0
    #allocation3 [shape = 'u8[16384]{0}', space=vmem, size = 0x4000, scoped, tag = 'output window, operand 0, single buffered']
    #allocation4 [shape = 's32[1]{0}', space=sflag, size = 0x4, scoped, tag = 'scoped memory for seqvae_forward_pallas.1']
    %21 = vsyncpa [#allocation4], 0
    // Predicated region
    $region2: #{seqvae_forward_pallas.1} parent=1 // pred_check
      _
    $region3: #{seqvae_forward_pallas.1} parent=1 // pred_check_branch
      %23 = sbr.rel (0) target = $region5
    $region4: #{seqvae_forward_pallas.1} parent=1 // pred_region
      _
    $region5: #{seqvae_forward_pallas.1} parent=1 // pred_fallthru
      _
    // Predicated region
    $region6: #{seqvae_forward_pallas.1} parent=1 // pred_check
      _
    $region7: #{seqvae_forward_pallas.1} parent=1 // pred_check_branch
      %25 = sbr.rel (0) target = $region9
    $region8: #{seqvae_forward_pallas.1} parent=1 // pred_region
      _
    $region9: #{seqvae_forward_pallas.1} parent=1 // pred_fallthru
      _
    // Predicated region
    $region10: #{seqvae_forward_pallas.1} parent=1 // pred_check
      _
    $region11: #{seqvae_forward_pallas.1} parent=1 // pred_check_branch
      %27 = sbr.rel (0) target = $region13
    $region12: #{seqvae_forward_pallas.1} parent=1 // pred_region
      _
    $region13: #{seqvae_forward_pallas.1} parent=1 // pred_fallthru
      _
    // Predicated region
    $region14: #{seqvae_forward_pallas.1} parent=1 // pred_check
      _
    $region15: #{seqvae_forward_pallas.1} parent=1 // pred_check_branch
      %29 = sbr.rel (0) target = $region17
    $region16: #{seqvae_forward_pallas.1} parent=1 // pred_region
      _
    $region17: #{seqvae_forward_pallas.1} parent=1 // pred_fallthru
      _
    // Predicated region
    $region18: #{seqvae_forward_pallas.1} parent=1 // pred_check
      _
    $region19: #{seqvae_forward_pallas.1} parent=1 // pred_check_branch
      %31 = sbr.rel (0) target = $region21
    $region20: #{seqvae_forward_pallas.1} parent=1 // pred_region
      _
    $region21: #{seqvae_forward_pallas.1} parent=1 // pred_fallthru
      _
    // Predicated region
    $region22: #{seqvae_forward_pallas.1} parent=1 // pred_check
      _
    $region23: #{seqvae_forward_pallas.1} parent=1 // pred_check_branch
      %33 = sbr.rel (0) target = $region25
    $region24: #{seqvae_forward_pallas.1} parent=1 // pred_region
      _
    $region25: #{seqvae_forward_pallas.1} parent=1 // pred_fallthru
      _
    // Predicated region
    $region26: #{seqvae_forward_pallas.1} parent=1 // pred_check
      _
    $region27: #{seqvae_forward_pallas.1} parent=1 // pred_check_branch
      %35 = sbr.rel (0) target = $region29
    $region28: #{seqvae_forward_pallas.1} parent=1 // pred_region
      _
    $region29: #{seqvae_forward_pallas.1} parent=1 // pred_fallthru
      _
    // Predicated region
    $region30: #{seqvae_forward_pallas.1} parent=1 // pred_check
      _
    $region31: #{seqvae_forward_pallas.1} parent=1 // pred_check_branch
      %37 = sbr.rel (0) target = $region33
    $region32: #{seqvae_forward_pallas.1} parent=1 // pred_region
      _
    $region33: #{seqvae_forward_pallas.1} parent=1 // pred_fallthru
      _
    // Predicated region
    $region34: #{seqvae_forward_pallas.1} parent=1 // pred_check
      _
    $region35: #{seqvae_forward_pallas.1} parent=1 // pred_check_branch
      %39 = sbr.rel (0) target = $region37
    $region36: #{seqvae_forward_pallas.1} parent=1 // pred_region
      _
    $region37: #{seqvae_forward_pallas.1} parent=1 // pred_fallthru
      _
    // Predicated region
    $region38: #{seqvae_forward_pallas.1} parent=1 // pred_check
      _
    $region39: #{seqvae_forward_pallas.1} parent=1 // pred_check_branch
      %41 = sbr.rel (0) target = $region41
    $region40: #{seqvae_forward_pallas.1} parent=1 // pred_region
      _
    $region41: #{seqvae_forward_pallas.1} parent=1 // pred_fallthru
      _
    // Predicated region
    $region42: #{seqvae_forward_pallas.1} parent=1 // pred_check
      _
    $region43: #{seqvae_forward_pallas.1} parent=1 // pred_check_branch
      %43 = sbr.rel (0) target = $region45
    $region44: #{seqvae_forward_pallas.1} parent=1 // pred_region
      _
    $region45: #{seqvae_forward_pallas.1} parent=1 // pred_fallthru
      _
    // Predicated region
    $region46: #{seqvae_forward_pallas.1} parent=1 // pred_check
      _
    $region47: #{seqvae_forward_pallas.1} parent=1 // pred_check_branch
      %45 = sbr.rel (0) target = $region49
    $region48: #{seqvae_forward_pallas.1} parent=1 // pred_region
      _
    $region49: #{seqvae_forward_pallas.1} parent=1 // pred_fallthru
      _
    // Predicated region
    $region50: #{seqvae_forward_pallas.1} parent=1 // pred_check
      _
    $region51: #{seqvae_forward_pallas.1} parent=1 // pred_check_branch
      %47 = sbr.rel (0) target = $region53
    $region52: #{seqvae_forward_pallas.1} parent=1 // pred_region
      _
    $region53: #{seqvae_forward_pallas.1} parent=1 // pred_fallthru
      _
    // Predicated region
    $region54: #{seqvae_forward_pallas.1} parent=1 // pred_check
      _
    $region55: #{seqvae_forward_pallas.1} parent=1 // pred_check_branch
      %49 = sbr.rel (0) target = $region57
    $region56: #{seqvae_forward_pallas.1} parent=1 // pred_region
      _
    $region57: #{seqvae_forward_pallas.1} parent=1 // pred_fallthru
      _
    %v50 = vld [vmem:[%s0] sm:$0xff]
    %v51 = vld [vmem:[%s0 + $0x8] sm:$0xff]
    %v52 = vld [vmem:[%s2] sm:$0xff]
    %v53 = vld [vmem:[%s2 + $0x8] sm:$0xff]
    %v54 = vld [vmem:[%s4] sm:$0x1]
    %v56 = vlaneseq
    %v57 = vshrl.u32 %v56, 7
    %v58 = vsub.s32 0, %v57
    %v59 = vrot.slane %v54, %v58
    %vm61 = vcmask 130048
    %v63 = vsel %vm61, %v50, 0
    %v66 = vsel %vm61, %v51, 0
    %68 = vmatprep.subr.mxu0 0.0
    %69 = vmatpush1.msra.mxu0 %v52
    %70 = vmatprep.subr.mxu0 0.0
    %71 = vmatpush1.msra.mxu0 %v53
    %72 = vmatprep.subr.mxu0 0.0
    %73 = vmatpush1.msra.mxu0 0.0
    %74 = vmatprep.subr.mxu0 0.0
    %75 = vmatpush1.msra.mxu0 0.0
    %76 = vmatprep.subr.mxu0 0.0
    %77 = vmatpush1.msra.mxu0 0.0
    %78 = vmatprep.subr.mxu0 0.0
    %79 = vmatpush1.msra.mxu0 0.0
    %80 = vmatprep.subr.mxu0 0.0
    %81 = vmatpush1.msra.mxu0 0.0
    %82 = vmatprep.subr.mxu0 0.0
    %83 = vmatpush1.msra.mxu0 0.0
    %84 = vmatprep.subr.mxu0 0.0
    %85 = vmatpush1.msra.mxu0 0.0
    %86 = vmatprep.subr.mxu0 0.0
    %87 = vmatpush1.msra.mxu0 0.0
    %88 = vmatprep.subr.mxu0 0.0
    %89 = vmatpush1.msra.mxu0 0.0
    %90 = vmatprep.subr.mxu0 0.0
    %91 = vmatpush1.msra.mxu0 0.0
    %92 = vmatprep.subr.mxu0 0.0
    %93 = vmatpush1.msra.mxu0 0.0
    %94 = vmatprep.subr.mxu0 0.0
    %95 = vmatpush1.msra.mxu0 0.0
    %96 = vmatprep.subr.mxu0 0.0
    %97 = vmatpush1.msra.mxu0 0.0
    %98 = vmatprep.subr.mxu0 0.0
    %99 = vmatpush1.msra.mxu0 0.0
    %100 = vmatprep.subr.mxu0 0.0
    %101 = vmatpush1.msra.mxu0 0.0
    %102 = vmatprep.subr.mxu0 0.0
    %103 = vmatpush1.msra.mxu0 0.0
    %104 = vmatprep.subr.mxu0 0.0
    %105 = vmatpush1.msra.mxu0 0.0
    %106 = vmatprep.subr.mxu0 0.0
    %107 = vmatpush1.msra.mxu0 0.0
    %108 = vmatprep.subr.mxu0 0.0
    %109 = vmatpush1.msra.mxu0 0.0
    %110 = vmatprep.subr.mxu0 0.0
    %111 = vmatpush1.msra.mxu0 0.0
    %112 = vmatprep.subr.mxu0 0.0
    %113 = vmatpush1.msra.mxu0 0.0
    %114 = vmatprep.subr.mxu0 0.0
    %115 = vmatpush1.msra.mxu0 0.0
    %116 = vmatprep.subr.mxu0 0.0
    %117 = vmatpush1.msra.mxu0 0.0
    %118 = vmatprep.subr.mxu0 0.0
    %119 = vmatpush1.msra.mxu0 0.0
    %120 = vmatprep.subr.mxu0 0.0
    %121 = vmatpush1.msra.mxu0 0.0
    %122 = vmatprep.subr.mxu0 0.0
    %123 = vmatpush1.msra.mxu0 0.0
    %124 = vmatprep.subr.mxu0 0.0
    %125 = vmatpush1.msra.mxu0 0.0
    %126 = vmatprep.subr.mxu0 0.0
    %127 = vmatpush1.msra.mxu0 0.0
    %128 = vmatprep.subr.mxu0 0.0
    %129 = vmatpush1.msra.mxu0 0.0
    %130 = vmatprep.subr.mxu0 0.0
    %131 = vmatpush1.msra.mxu0 0.0
    %132 = vmatprep.mubr.f32.mxu0 0.0
    %133 = vmatmul.mubr.f32.gmra.mrb[0].mxu0 %v63
    %v134 = vpop.f32.mrb[0].mxu0
    %v135 = vadd.f32 %v59, %v134
    %v136 = vpop.f32.mrb[0].mxu0
    %137 = vmatprep.mubr.f32.mxu0 0.0
    %138 = vmatmul.mubr.f32.gmra.mrb[0].mxu0 %v66
    %v139 = vpop.f32.mrb[0].mxu0
    %v140 = vadd.f32 %v59, %v139
    %v141 = vpop.f32.mrb[0].mxu0
    %142 = vdwg.mxu0
    %v143 = vld [vmem:[%s3] sm:$0xff]
    %v144 = vld [vmem:[%s3 + $0x8] sm:$0xff]
    %v145 = vld [vmem:[%s3 + $0x10] sm:$0xff]
    %v146 = vld [vmem:[%s3 + $0x18] sm:$0xff]
    %v147 = vld [vmem:[%s5] sm:$0x1]
    %vm148 = vcmask 261120
    %v150 = vsel %vm148, 0.0, 0
    %152 = vmatprep.subr.mxu0 0.0
    %153 = vmatpush1.msra.mxu0 %v143
    %154 = vmatprep.subr.mxu0 0.0
    %155 = vmatpush1.msra.mxu0 %v144
    %156 = vmatprep.subr.mxu0 0.0
    %157 = vmatpush1.msra.mxu0 %v145
    %158 = vmatprep.subr.mxu0 0.0
    %159 = vmatpush1.msra.mxu0 %v146
    %160 = vmatprep.subr.mxu0 0.0
    %161 = vmatpush1.msra.mxu0 0.0
    %162 = vmatprep.subr.mxu0 0.0
    %163 = vmatpush1.msra.mxu0 0.0
    %164 = vmatprep.subr.mxu0 0.0
    %165 = vmatpush1.msra.mxu0 0.0
    %166 = vmatprep.subr.mxu0 0.0
    %167 = vmatpush1.msra.mxu0 0.0
    %168 = vmatprep.subr.mxu0 0.0
    %169 = vmatpush1.msra.mxu0 0.0
    %170 = vmatprep.subr.mxu0 0.0
    %171 = vmatpush1.msra.mxu0 0.0
    %172 = vmatprep.subr.mxu0 0.0
    %173 = vmatpush1.msra.mxu0 0.0
    %174 = vmatprep.subr.mxu0 0.0
    %175 = vmatpush1.msra.mxu0 0.0
    %176 = vmatprep.subr.mxu0 0.0
    %177 = vmatpush1.msra.mxu0 0.0
    %178 = vmatprep.subr.mxu0 0.0
    %179 = vmatpush1.msra.mxu0 0.0
    %180 = vmatprep.subr.mxu0 0.0
    %181 = vmatpush1.msra.mxu0 0.0
    %182 = vmatprep.subr.mxu0 0.0
    %183 = vmatpush1.msra.mxu0 0.0
    %184 = vmatprep.subr.mxu0 0.0
    %185 = vmatpush1.msra.mxu0 0.0
    %186 = vmatprep.subr.mxu0 0.0
    %187 = vmatpush1.msra.mxu0 0.0
    %188 = vmatprep.subr.mxu0 0.0
    %189 = vmatpush1.msra.mxu0 0.0
    %190 = vmatprep.subr.mxu0 0.0
    %191 = vmatpush1.msra.mxu0 0.0
    %192 = vmatprep.subr.mxu0 0.0
    %193 = vmatpush1.msra.mxu0 0.0
    %194 = vmatprep.subr.mxu0 0.0
    %195 = vmatpush1.msra.mxu0 0.0
    %196 = vmatprep.subr.mxu0 0.0
    %197 = vmatpush1.msra.mxu0 0.0
    %198 = vmatprep.subr.mxu0 0.0
    %199 = vmatpush1.msra.mxu0 0.0
    %200 = vmatprep.subr.mxu0 0.0
    %201 = vmatpush1.msra.mxu0 0.0
    %202 = vmatprep.subr.mxu0 0.0
    %203 = vmatpush1.msra.mxu0 0.0
    %204 = vmatprep.subr.mxu0 0.0
    %205 = vmatpush1.msra.mxu0 0.0
    %206 = vmatprep.subr.mxu0 0.0
    %207 = vmatpush1.msra.mxu0 0.0
    %208 = vmatprep.subr.mxu0 0.0
    %209 = vmatpush1.msra.mxu0 0.0
    %210 = vmatprep.subr.mxu0 0.0
    %211 = vmatpush1.msra.mxu0 0.0
    %212 = vmatprep.subr.mxu0 0.0
    %213 = vmatpush1.msra.mxu0 0.0
    %214 = vmatprep.subr.mxu0 0.0
    %215 = vmatpush1.msra.mxu0 0.0
    %216 = vmatprep.mubr.f32.mxu0 0.0
    %217 = vmatmul.mubr.f32.gmra.mrb[0].mxu0 %v150
    %v218 = vpop.f32.mrb[0].mxu0
    %v219 = vadd.f32 0.0, %v218
    %v220 = vpop.f32.mrb[0].mxu0
    %221 = vdwg.mxu0
    %v223 = vrot.slane %v219, 1
    %v226 = vadd.f32 %v135, %v219
    %v227 = vadd.f32 %v140, %v223
    %v228 = vmul.f32 %v226, 0.5
    %v229 = vmul.f32 %v227, 0.5
    %v230 = vtanh.pop %v228
    %v231 = vtanh.pop %v229
    %v232 = vadd.f32 %v230, 1.0
    %v233 = vadd.f32 %v231, 1.0
    %v234 = vmul.f32 %v232, 0.5
    %v235 = vmul.f32 %v233, 0.5
    %v237 = vlaneseq
    %v238 = vshrl.u32 %v237, 7
    %v239 = vsub.s32 0, %v238
    %v240 = vrot.slane %v147, %v239
    %241 = vrot.lane.b32.xlu0 %v240, 64
    %v242 = vpop.permute.xlu0 %241
    %v244 = vadd.f32 %v219, %v242
    %v246 = vrot.slane %v244, 1
    %247 = vrot.lane.b32.xlu0 %v244, 64
    %v248 = vpop.permute.xlu0 %247
    %249 = vrot.lane.b32.xlu0 %v246, 64
    %v250 = vpop.permute.xlu0 %249
    %v253 = vmul.f32 %v234, %v248
    %v254 = vmul.f32 %v235, %v250
    %257 = vrot.lane.b32.xlu0 %v253, 64
    %v258 = vpop.permute.xlu0 %257
    %259 = vrot.lane.b32.xlu0 %v254, 64
    %v260 = vpop.permute.xlu0 %259
    %v263 = vadd.f32 %v135, %v258
    %v264 = vadd.f32 %v140, %v260
    %v265 = vtanh.pop %v263
    %v266 = vtanh.pop %v264
    %v267 = vsub.f32 1.0, %v234
    %v268 = vsub.f32 1.0, %v235
    %271 = vrot.lane.b32.xlu0 %v265, 96
    %v272 = vpop.permute.xlu0 %271
    %273 = vrot.lane.b32.xlu0 %v266, 96
    %v274 = vpop.permute.xlu0 %273
    %v277 = vmul.f32 %v267, %v272
    %v278 = vmul.f32 %v268, %v274
    %v279 = vmul.f32 %v234, 0.0
    %v280 = vmul.f32 %v235, 0.0
    %v281 = vadd.f32 %v277, %v279
    %v282 = vadd.f32 %v278, %v280
    %285 = vrot.lane.b32.xlu0 %v281, 96
    %v286 = vpop.permute.xlu0 %285
    %287 = vrot.lane.b32.xlu0 %v282, 96
    %v288 = vpop.permute.xlu0 %287
    %vm291 = vcmask 253952
    %292 = vst.msk [vmem:[#allocation2] sm:$0x1] %vm291, %v286
    %293 = vst.msk [vmem:[#allocation2 + $0x8] sm:$0x1] %vm291, %v288
    %v294 = vrot.slane %v282, 7
    %vm295 = vcmask 1041409
    %v296 = vsel %vm295, %v294, %v281
    %297 = vrot.lane.b32.xlu0 %v296, 96
    %v298 = vpop.permute.xlu0 %297
    %v299 = vsel %vm148, %v298, 0
    %301 = vmatprep.subr.mxu0 0.0
    %302 = vmatpush1.msra.mxu0 %v143
    %303 = vmatprep.subr.mxu0 0.0
    %304 = vmatpush1.msra.mxu0 %v144
    %305 = vmatprep.subr.mxu0 0.0
    %306 = vmatpush1.msra.mxu0 %v145
    %307 = vmatprep.subr.mxu0 0.0
    %308 = vmatpush1.msra.mxu0 %v146
    %309 = vmatprep.subr.mxu0 0.0
    %310 = vmatpush1.msra.mxu0 0.0
    %311 = vmatprep.subr.mxu0 0.0
    %312 = vmatpush1.msra.mxu0 0.0
    %313 = vmatprep.subr.mxu0 0.0
    %314 = vmatpush1.msra.mxu0 0.0
    %315 = vmatprep.subr.mxu0 0.0
    %316 = vmatpush1.msra.mxu0 0.0
    %317 = vmatprep.subr.mxu0 0.0
    %318 = vmatpush1.msra.mxu0 0.0
    %319 = vmatprep.subr.mxu0 0.0
    %320 = vmatpush1.msra.mxu0 0.0
    %321 = vmatprep.subr.mxu0 0.0
    %322 = vmatpush1.msra.mxu0 0.0
    %323 = vmatprep.subr.mxu0 0.0
    %324 = vmatpush1.msra.mxu0 0.0
    %325 = vmatprep.subr.mxu0 0.0
    %326 = vmatpush1.msra.mxu0 0.0
    %327 = vmatprep.subr.mxu0 0.0
    %328 = vmatpush1.msra.mxu0 0.0
    %329 = vmatprep.subr.mxu0 0.0
    %330 = vmatpush1.msra.mxu0 0.0
    %331 = vmatprep.subr.mxu0 0.0
    %332 = vmatpush1.msra.mxu0 0.0
    %333 = vmatprep.subr.mxu0 0.0
    %334 = vmatpush1.msra.mxu0 0.0
    %335 = vmatprep.subr.mxu0 0.0
    %336 = vmatpush1.msra.mxu0 0.0
    %337 = vmatprep.subr.mxu0 0.0
    %338 = vmatpush1.msra.mxu0 0.0
    %339 = vmatprep.subr.mxu0 0.0
    %340 = vmatpush1.msra.mxu0 0.0
    %341 = vmatprep.subr.mxu0 0.0
    %342 = vmatpush1.msra.mxu0 0.0
    %343 = vmatprep.subr.mxu0 0.0
    %344 = vmatpush1.msra.mxu0 0.0
    %345 = vmatprep.subr.mxu0 0.0
    %346 = vmatpush1.msra.mxu0 0.0
    %347 = vmatprep.subr.mxu0 0.0
    %348 = vmatpush1.msra.mxu0 0.0
    %349 = vmatprep.subr.mxu0 0.0
    %350 = vmatpush1.msra.mxu0 0.0
    %351 = vmatprep.subr.mxu0 0.0
    %352 = vmatpush1.msra.mxu0 0.0
    %353 = vmatprep.subr.mxu0 0.0
    %354 = vmatpush1.msra.mxu0 0.0
    %355 = vmatprep.subr.mxu0 0.0
    %356 = vmatpush1.msra.mxu0 0.0
    %357 = vmatprep.subr.mxu0 0.0
    %358 = vmatpush1.msra.mxu0 0.0
    %359 = vmatprep.subr.mxu0 0.0
    %360 = vmatpush1.msra.mxu0 0.0
    %361 = vmatprep.subr.mxu0 0.0
    %362 = vmatpush1.msra.mxu0 0.0
    %363 = vmatprep.subr.mxu0 0.0
    %364 = vmatpush1.msra.mxu0 0.0
    %365 = vmatprep.mubr.f32.mxu0 0.0
    %366 = vmatmul.mubr.f32.gmra.mrb[0].mxu0 %v299
    %v367 = vpop.f32.mrb[0].mxu0
    %v368 = vadd.f32 0.0, %v367
    %v369 = vpop.f32.mrb[0].mxu0
    %370 = vdwg.mxu0
    %v372 = vrot.slane %v368, 7
    %v375 = vadd.f32 %v135, %v372
    %v376 = vadd.f32 %v140, %v368
    %v377 = vmul.f32 %v375, 0.5
    %v378 = vmul.f32 %v376, 0.5
    %v379 = vtanh.pop %v377
    %v380 = vtanh.pop %v378
    %v381 = vadd.f32 %v379, 1.0
    %v382 = vadd.f32 %v380, 1.0
    %v383 = vmul.f32 %v381, 0.5
    %v384 = vmul.f32 %v382, 0.5
    %v385 = vadd.f32 %v368, %v242
    %v387 = vrot.slane %v385, 7
    %388 = vrot.lane.b32.xlu0 %v387, 64
    %v389 = vpop.permute.xlu0 %388
    %390 = vrot.lane.b32.xlu0 %v385, 64
    %v391 = vpop.permute.xlu0 %390
    %v394 = vmul.f32 %v383, %v389
    %v395 = vmul.f32 %v384, %v391
    %398 = vrot.lane.b32.xlu0 %v394, 64
    %v399 = vpop.permute.xlu0 %398
    %400 = vrot.lane.b32.xlu0 %v395, 64
    %v401 = vpop.permute.xlu0 %400
    %v404 = vadd.f32 %v135, %v399
    %v405 = vadd.f32 %v140, %v401
    %v406 = vtanh.pop %v404
    %v407 = vtanh.pop %v405
    %v408 = vsub.f32 1.0, %v383
    %v409 = vsub.f32 1.0, %v384
    %412 = vrot.lane.b32.xlu0 %v406, 96
    %v413 = vpop.permute.xlu0 %412
    %414 = vrot.lane.b32.xlu0 %v407, 96
    %v415 = vpop.permute.xlu0 %414
    %v418 = vmul.f32 %v408, %v413
    %v419 = vmul.f32 %v409, %v415
    %v420 = vrot.slane %v281, 7
    %v423 = vmul.f32 %v383, %v420
    %v424 = vmul.f32 %v384, %v294
    %v425 = vadd.f32 %v418, %v423
    %v426 = vadd.f32 %v419, %v424
    %429 = vrot.lane.b32.xlu0 %v425, 96
    %v430 = vpop.permute.xlu0 %429
    %431 = vrot.lane.b32.xlu0 %v426, 96
    %v432 = vpop.permute.xlu0 %431
    %vm435 = vcmask 254977
    %436 = vst.msk [vmem:[#allocation2] sm:$0x2] %vm435, %v430
    %437 = vst.msk [vmem:[#allocation2 + $0x8] sm:$0x2] %vm435, %v432
    %v438 = vrot.slane %v425, 1
    %v439 = vsel %vm295, %v426, %v438
    %440 = vrot.lane.b32.xlu0 %v439, 96
    %v441 = vpop.permute.xlu0 %440
    %v442 = vsel %vm148, %v441, 0
    %444 = vmatprep.subr.mxu0 0.0
    %445 = vmatpush1.msra.mxu0 %v143
    %446 = vmatprep.subr.mxu0 0.0
    %447 = vmatpush1.msra.mxu0 %v144
    %448 = vmatprep.subr.mxu0 0.0
    %449 = vmatpush1.msra.mxu0 %v145
    %450 = vmatprep.subr.mxu0 0.0
    %451 = vmatpush1.msra.mxu0 %v146
    %452 = vmatprep.subr.mxu0 0.0
    %453 = vmatpush1.msra.mxu0 0.0
    %454 = vmatprep.subr.mxu0 0.0
    %455 = vmatpush1.msra.mxu0 0.0
    %456 = vmatprep.subr.mxu0 0.0
    %457 = vmatpush1.msra.mxu0 0.0
    %458 = vmatprep.subr.mxu0 0.0
    %459 = vmatpush1.msra.mxu0 0.0
    %460 = vmatprep.subr.mxu0 0.0
    %461 = vmatpush1.msra.mxu0 0.0
    %462 = vmatprep.subr.mxu0 0.0
    %463 = vmatpush1.msra.mxu0 0.0
    %464 = vmatprep.subr.mxu0 0.0
    %465 = vmatpush1.msra.mxu0 0.0
    %466 = vmatprep.subr.mxu0 0.0
    %467 = vmatpush1.msra.mxu0 0.0
    %468 = vmatprep.subr.mxu0 0.0
    %469 = vmatpush1.msra.mxu0 0.0
    %470 = vmatprep.subr.mxu0 0.0
    %471 = vmatpush1.msra.mxu0 0.0
    %472 = vmatprep.subr.mxu0 0.0
    %473 = vmatpush1.msra.mxu0 0.0
    %474 = vmatprep.subr.mxu0 0.0
    %475 = vmatpush1.msra.mxu0 0.0
    %476 = vmatprep.subr.mxu0 0.0
    %477 = vmatpush1.msra.mxu0 0.0
    %478 = vmatprep.subr.mxu0 0.0
    %479 = vmatpush1.msra.mxu0 0.0
    %480 = vmatprep.subr.mxu0 0.0
    %481 = vmatpush1.msra.mxu0 0.0
    %482 = vmatprep.subr.mxu0 0.0
    %483 = vmatpush1.msra.mxu0 0.0
    %484 = vmatprep.subr.mxu0 0.0
    %485 = vmatpush1.msra.mxu0 0.0
    %486 = vmatprep.subr.mxu0 0.0
    %487 = vmatpush1.msra.mxu0 0.0
    %488 = vmatprep.subr.mxu0 0.0
    %489 = vmatpush1.msra.mxu0 0.0
    %490 = vmatprep.subr.mxu0 0.0
    %491 = vmatpush1.msra.mxu0 0.0
    %492 = vmatprep.subr.mxu0 0.0
    %493 = vmatpush1.msra.mxu0 0.0
    %494 = vmatprep.subr.mxu0 0.0
    %495 = vmatpush1.msra.mxu0 0.0
    %496 = vmatprep.subr.mxu0 0.0
    %497 = vmatpush1.msra.mxu0 0.0
    %498 = vmatprep.subr.mxu0 0.0
    %499 = vmatpush1.msra.mxu0 0.0
    %500 = vmatprep.subr.mxu0 0.0
    %501 = vmatpush1.msra.mxu0 0.0
    %502 = vmatprep.subr.mxu0 0.0
    %503 = vmatpush1.msra.mxu0 0.0
    %504 = vmatprep.subr.mxu0 0.0
    %505 = vmatpush1.msra.mxu0 0.0
    %506 = vmatprep.subr.mxu0 0.0
    %507 = vmatpush1.msra.mxu0 0.0
    %508 = vmatprep.mubr.f32.mxu0 0.0
    %509 = vmatmul.mubr.f32.gmra.mrb[0].mxu0 %v442
    %v510 = vpop.f32.mrb[0].mxu0
    %v511 = vadd.f32 0.0, %v510
    %v512 = vpop.f32.mrb[0].mxu0
    %513 = vdwg.mxu0
    %v515 = vrot.slane %v511, 6
    %v516 = vrot.slane %v511, 7
    %v519 = vadd.f32 %v135, %v515
    %v520 = vadd.f32 %v140, %v516
    %v521 = vmul.f32 %v519, 0.5
    %v522 = vmul.f32 %v520, 0.5
    %v523 = vtanh.pop %v521
    %v524 = vtanh.pop %v522
    %v525 = vadd.f32 %v523, 1.0
    %v526 = vadd.f32 %v524, 1.0
    %v527 = vmul.f32 %v525, 0.5
    %v528 = vmul.f32 %v526, 0.5
    %v529 = vadd.f32 %v511, %v242
    %v531 = vrot.slane %v529, 6
    %v532 = vrot.slane %v529, 7
    %533 = vrot.lane.b32.xlu0 %v531, 64
    %v534 = vpop.permute.xlu0 %533
    %535 = vrot.lane.b32.xlu0 %v532, 64
    %v536 = vpop.permute.xlu0 %535
    %v539 = vmul.f32 %v527, %v534
    %v540 = vmul.f32 %v528, %v536
    %543 = vrot.lane.b32.xlu0 %v539, 64
    %v544 = vpop.permute.xlu0 %543
    %545 = vrot.lane.b32.xlu0 %v540, 64
    %v546 = vpop.permute.xlu0 %545
    %v549 = vadd.f32 %v135, %v544
    %v550 = vadd.f32 %v140, %v546
    %v551 = vtanh.pop %v549
    %v552 = vtanh.pop %v550
    %v553 = vsub.f32 1.0, %v527
    %v554 = vsub.f32 1.0, %v528
    %557 = vrot.lane.b32.xlu0 %v551, 96
    %v558 = vpop.permute.xlu0 %557
    %559 = vrot.lane.b32.xlu0 %v552, 96
    %v560 = vpop.permute.xlu0 %559
    %v563 = vmul.f32 %v553, %v558
    %v564 = vmul.f32 %v554, %v560
    %v565 = vrot.slane %v425, 7
    %v566 = vrot.slane %v426, 7
    %v569 = vmul.f32 %v527, %v565
    %v570 = vmul.f32 %v528, %v566
    %v571 = vadd.f32 %v563, %v569
    %v572 = vadd.f32 %v564, %v570
    %575 = vrot.lane.b32.xlu0 %v571, 96
    %v576 = vpop.permute.xlu0 %575
    %577 = vrot.lane.b32.xlu0 %v572, 96
    %v578 = vpop.permute.xlu0 %577
    %vm581 = vcmask 256002
    %582 = vst.msk [vmem:[#allocation2] sm:$0x4] %vm581, %v576
    %583 = vst.msk [vmem:[#allocation2 + $0x8] sm:$0x4] %vm581, %v578
    %v584 = vrot.slane %v571, 2
    %v585 = vrot.slane %v572, 1
    %v586 = vsel %vm295, %v585, %v584
    %587 = vrot.lane.b32.xlu0 %v586, 96
    %v588 = vpop.permute.xlu0 %587
    %v589 = vsel %vm148, %v588, 0
    %591 = vmatprep.subr.mxu0 0.0
    %592 = vmatpush1.msra.mxu0 %v143
    %593 = vmatprep.subr.mxu0 0.0
    %594 = vmatpush1.msra.mxu0 %v144
    %595 = vmatprep.subr.mxu0 0.0
    %596 = vmatpush1.msra.mxu0 %v145
    %597 = vmatprep.subr.mxu0 0.0
    %598 = vmatpush1.msra.mxu0 %v146
    %599 = vmatprep.subr.mxu0 0.0
    %600 = vmatpush1.msra.mxu0 0.0
    %601 = vmatprep.subr.mxu0 0.0
    %602 = vmatpush1.msra.mxu0 0.0
    %603 = vmatprep.subr.mxu0 0.0
    %604 = vmatpush1.msra.mxu0 0.0
    %605 = vmatprep.subr.mxu0 0.0
    %606 = vmatpush1.msra.mxu0 0.0
    %607 = vmatprep.subr.mxu0 0.0
    %608 = vmatpush1.msra.mxu0 0.0
    %609 = vmatprep.subr.mxu0 0.0
    %610 = vmatpush1.msra.mxu0 0.0
    %611 = vmatprep.subr.mxu0 0.0
    %612 = vmatpush1.msra.mxu0 0.0
    %613 = vmatprep.subr.mxu0 0.0
    %614 = vmatpush1.msra.mxu0 0.0
    %615 = vmatprep.subr.mxu0 0.0
    %616 = vmatpush1.msra.mxu0 0.0
    %617 = vmatprep.subr.mxu0 0.0
    %618 = vmatpush1.msra.mxu0 0.0
    %619 = vmatprep.subr.mxu0 0.0
    %620 = vmatpush1.msra.mxu0 0.0
    %621 = vmatprep.subr.mxu0 0.0
    %622 = vmatpush1.msra.mxu0 0.0
    %623 = vmatprep.subr.mxu0 0.0
    %624 = vmatpush1.msra.mxu0 0.0
    %625 = vmatprep.subr.mxu0 0.0
    %626 = vmatpush1.msra.mxu0 0.0
    %627 = vmatprep.subr.mxu0 0.0
    %628 = vmatpush1.msra.mxu0 0.0
    %629 = vmatprep.subr.mxu0 0.0
    %630 = vmatpush1.msra.mxu0 0.0
    %631 = vmatprep.subr.mxu0 0.0
    %632 = vmatpush1.msra.mxu0 0.0
    %633 = vmatprep.subr.mxu0 0.0
    %634 = vmatpush1.msra.mxu0 0.0
    %635 = vmatprep.subr.mxu0 0.0
    %636 = vmatpush1.msra.mxu0 0.0
    %637 = vmatprep.subr.mxu0 0.0
    %638 = vmatpush1.msra.mxu0 0.0
    %639 = vmatprep.subr.mxu0 0.0
    %640 = vmatpush1.msra.mxu0 0.0
    %641 = vmatprep.subr.mxu0 0.0
    %642 = vmatpush1.msra.mxu0 0.0
    %643 = vmatprep.subr.mxu0 0.0
    %644 = vmatpush1.msra.mxu0 0.0
    %645 = vmatprep.subr.mxu0 0.0
    %646 = vmatpush1.msra.mxu0 0.0
    %647 = vmatprep.subr.mxu0 0.0
    %648 = vmatpush1.msra.mxu0 0.0
    %649 = vmatprep.subr.mxu0 0.0
    %650 = vmatpush1.msra.mxu0 0.0
    %651 = vmatprep.subr.mxu0 0.0
    %652 = vmatpush1.msra.mxu0 0.0
    %653 = vmatprep.subr.mxu0 0.0
    %654 = vmatpush1.msra.mxu0 0.0
    %655 = vmatprep.mubr.f32.mxu0 0.0
    %656 = vmatmul.mubr.f32.gmra.mrb[0].mxu0 %v589
    %v657 = vpop.f32.mrb[0].mxu0
    %v658 = vadd.f32 0.0, %v657
    %v659 = vpop.f32.mrb[0].mxu0
    %660 = vdwg.mxu0
    %v662 = vrot.slane %v658, 5
    %v663 = vrot.slane %v658, 6
    %v666 = vadd.f32 %v135, %v662
    %v667 = vadd.f32 %v140, %v663
    %v668 = vmul.f32 %v666, 0.5
    %v669 = vmul.f32 %v667, 0.5
    %v670 = vtanh.pop %v668
    %v671 = vtanh.pop %v669
    %v672 = vadd.f32 %v670, 1.0
    %v673 = vadd.f32 %v671, 1.0
    %v674 = vmul.f32 %v672, 0.5
    %v675 = vmul.f32 %v673, 0.5
    %v676 = vadd.f32 %v658, %v242
    %v678 = vrot.slane %v676, 5
    %v679 = vrot.slane %v676, 6
    %680 = vrot.lane.b32.xlu0 %v678, 64
    %v681 = vpop.permute.xlu0 %680
    %682 = vrot.lane.b32.xlu0 %v679, 64
    %v683 = vpop.permute.xlu0 %682
    %v686 = vmul.f32 %v674, %v681
    %v687 = vmul.f32 %v675, %v683
    %690 = vrot.lane.b32.xlu0 %v686, 64
    %v691 = vpop.permute.xlu0 %690
    %692 = vrot.lane.b32.xlu0 %v687, 64
    %v693 = vpop.permute.xlu0 %692
    %v696 = vadd.f32 %v135, %v691
    %v697 = vadd.f32 %v140, %v693
    %v698 = vtanh.pop %v696
    %v699 = vtanh.pop %v697
    %v700 = vsub.f32 1.0, %v674
    %v701 = vsub.f32 1.0, %v675
    %704 = vrot.lane.b32.xlu0 %v698, 96
    %v705 = vpop.permute.xlu0 %704
    %706 = vrot.lane.b32.xlu0 %v699, 96
    %v707 = vpop.permute.xlu0 %706
    %v710 = vmul.f32 %v700, %v705
    %v711 = vmul.f32 %v701, %v707
    %v712 = vrot.slane %v571, 7
    %v713 = vrot.slane %v572, 7
    %v716 = vmul.f32 %v674, %v712
    %v717 = vmul.f32 %v675, %v713
    %v718 = vadd.f32 %v710, %v716
    %v719 = vadd.f32 %v711, %v717
    %722 = vrot.lane.b32.xlu0 %v718, 96
    %v723 = vpop.permute.xlu0 %722
    %724 = vrot.lane.b32.xlu0 %v719, 96
    %v725 = vpop.permute.xlu0 %724
    %vm728 = vcmask 257027
    %729 = vst.msk [vmem:[#allocation2] sm:$0x8] %vm728, %v723
    %730 = vst.msk [vmem:[#allocation2 + $0x8] sm:$0x8] %vm728, %v725
    %v731 = vrot.slane %v718, 3
    %v732 = vrot.slane %v719, 2
    %v733 = vsel %vm295, %v732, %v731
    %734 = vrot.lane.b32.xlu0 %v733, 96
    %v735 = vpop.permute.xlu0 %734
    %v736 = vsel %vm148, %v735, 0
    %738 = vmatprep.subr.mxu0 0.0
    %739 = vmatpush1.msra.mxu0 %v143
    %740 = vmatprep.subr.mxu0 0.0
    %741 = vmatpush1.msra.mxu0 %v144
    %742 = vmatprep.subr.mxu0 0.0
    %743 = vmatpush1.msra.mxu0 %v145
    %744 = vmatprep.subr.mxu0 0.0
    %745 = vmatpush1.msra.mxu0 %v146
    %746 = vmatprep.subr.mxu0 0.0
    %747 = vmatpush1.msra.mxu0 0.0
    %748 = vmatprep.subr.mxu0 0.0
    %749 = vmatpush1.msra.mxu0 0.0
    %750 = vmatprep.subr.mxu0 0.0
    %751 = vmatpush1.msra.mxu0 0.0
    %752 = vmatprep.subr.mxu0 0.0
    %753 = vmatpush1.msra.mxu0 0.0
    %754 = vmatprep.subr.mxu0 0.0
    %755 = vmatpush1.msra.mxu0 0.0
    %756 = vmatprep.subr.mxu0 0.0
    %757 = vmatpush1.msra.mxu0 0.0
    %758 = vmatprep.subr.mxu0 0.0
    %759 = vmatpush1.msra.mxu0 0.0
    %760 = vmatprep.subr.mxu0 0.0
    %761 = vmatpush1.msra.mxu0 0.0
    %762 = vmatprep.subr.mxu0 0.0
    %763 = vmatpush1.msra.mxu0 0.0
    %764 = vmatprep.subr.mxu0 0.0
    %765 = vmatpush1.msra.mxu0 0.0
    %766 = vmatprep.subr.mxu0 0.0
    %767 = vmatpush1.msra.mxu0 0.0
    %768 = vmatprep.subr.mxu0 0.0
    %769 = vmatpush1.msra.mxu0 0.0
    %770 = vmatprep.subr.mxu0 0.0
    %771 = vmatpush1.msra.mxu0 0.0
    %772 = vmatprep.subr.mxu0 0.0
    %773 = vmatpush1.msra.mxu0 0.0
    %774 = vmatprep.subr.mxu0 0.0
    %775 = vmatpush1.msra.mxu0 0.0
    %776 = vmatprep.subr.mxu0 0.0
    %777 = vmatpush1.msra.mxu0 0.0
    %778 = vmatprep.subr.mxu0 0.0
    %779 = vmatpush1.msra.mxu0 0.0
    %780 = vmatprep.subr.mxu0 0.0
    %781 = vmatpush1.msra.mxu0 0.0
    %782 = vmatprep.subr.mxu0 0.0
    %783 = vmatpush1.msra.mxu0 0.0
    %784 = vmatprep.subr.mxu0 0.0
    %785 = vmatpush1.msra.mxu0 0.0
    %786 = vmatprep.subr.mxu0 0.0
    %787 = vmatpush1.msra.mxu0 0.0
    %788 = vmatprep.subr.mxu0 0.0
    %789 = vmatpush1.msra.mxu0 0.0
    %790 = vmatprep.subr.mxu0 0.0
    %791 = vmatpush1.msra.mxu0 0.0
    %792 = vmatprep.subr.mxu0 0.0
    %793 = vmatpush1.msra.mxu0 0.0
    %794 = vmatprep.subr.mxu0 0.0
    %795 = vmatpush1.msra.mxu0 0.0
    %796 = vmatprep.subr.mxu0 0.0
    %797 = vmatpush1.msra.mxu0 0.0
    %798 = vmatprep.subr.mxu0 0.0
    %799 = vmatpush1.msra.mxu0 0.0
    %800 = vmatprep.subr.mxu0 0.0
    %801 = vmatpush1.msra.mxu0 0.0
    %802 = vmatprep.mubr.f32.mxu0 0.0
    %803 = vmatmul.mubr.f32.gmra.mrb[0].mxu0 %v736
    %v804 = vpop.f32.mrb[0].mxu0
    %v805 = vadd.f32 0.0, %v804
    %v806 = vpop.f32.mrb[0].mxu0
    %807 = vdwg.mxu0
    %v809 = vrot.slane %v805, 4
    %v810 = vrot.slane %v805, 5
    %v813 = vadd.f32 %v135, %v809
    %v814 = vadd.f32 %v140, %v810
    %v815 = vmul.f32 %v813, 0.5
    %v816 = vmul.f32 %v814, 0.5
    %v817 = vtanh.pop %v815
    %v818 = vtanh.pop %v816
    %v819 = vadd.f32 %v817, 1.0
    %v820 = vadd.f32 %v818, 1.0
    %v821 = vmul.f32 %v819, 0.5
    %v822 = vmul.f32 %v820, 0.5
    %v823 = vadd.f32 %v805, %v242
    %v825 = vrot.slane %v823, 4
    %v826 = vrot.slane %v823, 5
    %827 = vrot.lane.b32.xlu0 %v825, 64
    %v828 = vpop.permute.xlu0 %827
    %829 = vrot.lane.b32.xlu0 %v826, 64
    %v830 = vpop.permute.xlu0 %829
    %v833 = vmul.f32 %v821, %v828
    %v834 = vmul.f32 %v822, %v830
    %837 = vrot.lane.b32.xlu0 %v833, 64
    %v838 = vpop.permute.xlu0 %837
    %839 = vrot.lane.b32.xlu0 %v834, 64
    %v840 = vpop.permute.xlu0 %839
    %v843 = vadd.f32 %v135, %v838
    %v844 = vadd.f32 %v140, %v840
    %v845 = vtanh.pop %v843
    %v846 = vtanh.pop %v844
    %v847 = vsub.f32 1.0, %v821
    %v848 = vsub.f32 1.0, %v822
    %851 = vrot.lane.b32.xlu0 %v845, 96
    %v852 = vpop.permute.xlu0 %851
    %853 = vrot.lane.b32.xlu0 %v846, 96
    %v854 = vpop.permute.xlu0 %853
    %v857 = vmul.f32 %v847, %v852
    %v858 = vmul.f32 %v848, %v854
    %v859 = vrot.slane %v718, 7
    %v860 = vrot.slane %v719, 7
    %v863 = vmul.f32 %v821, %v859
    %v864 = vmul.f32 %v822, %v860
    %v865 = vadd.f32 %v857, %v863
    %v866 = vadd.f32 %v858, %v864
    %869 = vrot.lane.b32.xlu0 %v865, 96
    %v870 = vpop.permute.xlu0 %869
    %871 = vrot.lane.b32.xlu0 %v866, 96
    %v872 = vpop.permute.xlu0 %871
    %vm875 = vcmask 258052
    %876 = vst.msk [vmem:[#allocation2] sm:$0x10] %vm875, %v870
    %877 = vst.msk [vmem:[#allocation2 + $0x8] sm:$0x10] %vm875, %v872
    %v878 = vrot.slane %v865, 4
    %v879 = vrot.slane %v866, 3
    %v880 = vsel %vm295, %v879, %v878
    %881 = vrot.lane.b32.xlu0 %v880, 96
    %v882 = vpop.permute.xlu0 %881
    %v883 = vsel %vm148, %v882, 0
    %885 = vmatprep.subr.mxu0 0.0
    %886 = vmatpush1.msra.mxu0 %v143
    %887 = vmatprep.subr.mxu0 0.0
    %888 = vmatpush1.msra.mxu0 %v144
    %889 = vmatprep.subr.mxu0 0.0
    %890 = vmatpush1.msra.mxu0 %v145
    %891 = vmatprep.subr.mxu0 0.0
    %892 = vmatpush1.msra.mxu0 %v146
    %893 = vmatprep.subr.mxu0 0.0
    %894 = vmatpush1.msra.mxu0 0.0
    %895 = vmatprep.subr.mxu0 0.0
    %896 = vmatpush1.msra.mxu0 0.0
    %897 = vmatprep.subr.mxu0 0.0
    %898 = vmatpush1.msra.mxu0 0.0
    %899 = vmatprep.subr.mxu0 0.0
    %900 = vmatpush1.msra.mxu0 0.0
    %901 = vmatprep.subr.mxu0 0.0
    %902 = vmatpush1.msra.mxu0 0.0
    %903 = vmatprep.subr.mxu0 0.0
    %904 = vmatpush1.msra.mxu0 0.0
    %905 = vmatprep.subr.mxu0 0.0
    %906 = vmatpush1.msra.mxu0 0.0
    %907 = vmatprep.subr.mxu0 0.0
    %908 = vmatpush1.msra.mxu0 0.0
    %909 = vmatprep.subr.mxu0 0.0
    %910 = vmatpush1.msra.mxu0 0.0
    %911 = vmatprep.subr.mxu0 0.0
    %912 = vmatpush1.msra.mxu0 0.0
    %913 = vmatprep.subr.mxu0 0.0
    %914 = vmatpush1.msra.mxu0 0.0
    %915 = vmatprep.subr.mxu0 0.0
    %916 = vmatpush1.msra.mxu0 0.0
    %917 = vmatprep.subr.mxu0 0.0
    %918 = vmatpush1.msra.mxu0 0.0
    %919 = vmatprep.subr.mxu0 0.0
    %920 = vmatpush1.msra.mxu0 0.0
    %921 = vmatprep.subr.mxu0 0.0
    %922 = vmatpush1.msra.mxu0 0.0
    %923 = vmatprep.subr.mxu0 0.0
    %924 = vmatpush1.msra.mxu0 0.0
    %925 = vmatprep.subr.mxu0 0.0
    %926 = vmatpush1.msra.mxu0 0.0
    %927 = vmatprep.subr.mxu0 0.0
    %928 = vmatpush1.msra.mxu0 0.0
    %929 = vmatprep.subr.mxu0 0.0
    %930 = vmatpush1.msra.mxu0 0.0
    %931 = vmatprep.subr.mxu0 0.0
    %932 = vmatpush1.msra.mxu0 0.0
    %933 = vmatprep.subr.mxu0 0.0
    %934 = vmatpush1.msra.mxu0 0.0
    %935 = vmatprep.subr.mxu0 0.0
    %936 = vmatpush1.msra.mxu0 0.0
    %937 = vmatprep.subr.mxu0 0.0
    %938 = vmatpush1.msra.mxu0 0.0
    %939 = vmatprep.subr.mxu0 0.0
    %940 = vmatpush1.msra.mxu0 0.0
    %941 = vmatprep.subr.mxu0 0.0
    %942 = vmatpush1.msra.mxu0 0.0
    %943 = vmatprep.subr.mxu0 0.0
    %944 = vmatpush1.msra.mxu0 0.0
    %945 = vmatprep.subr.mxu0 0.0
    %946 = vmatpush1.msra.mxu0 0.0
    %947 = vmatprep.subr.mxu0 0.0
    %948 = vmatpush1.msra.mxu0 0.0
    %949 = vmatprep.mubr.f32.mxu0 0.0
    %950 = vmatmul.mubr.f32.gmra.mrb[0].mxu0 %v883
    %v951 = vpop.f32.mrb[0].mxu0
    %v952 = vadd.f32 0.0, %v951
    %v953 = vpop.f32.mrb[0].mxu0
    %954 = vdwg.mxu0
    %v956 = vrot.slane %v952, 3
    %v957 = vrot.slane %v952, 4
    %v960 = vadd.f32 %v135, %v956
    %v961 = vadd.f32 %v140, %v957
    %v962 = vmul.f32 %v960, 0.5
    %v963 = vmul.f32 %v961, 0.5
    %v964 = vtanh.pop %v962
    %v965 = vtanh.pop %v963
    %v966 = vadd.f32 %v964, 1.0
    %v967 = vadd.f32 %v965, 1.0
    %v968 = vmul.f32 %v966, 0.5
    %v969 = vmul.f32 %v967, 0.5
    %v970 = vadd.f32 %v952, %v242
    %v972 = vrot.slane %v970, 3
    %v973 = vrot.slane %v970, 4
    %974 = vrot.lane.b32.xlu0 %v972, 64
    %v975 = vpop.permute.xlu0 %974
    %976 = vrot.lane.b32.xlu0 %v973, 64
    %v977 = vpop.permute.xlu0 %976
    %v980 = vmul.f32 %v968, %v975
    %v981 = vmul.f32 %v969, %v977
    %984 = vrot.lane.b32.xlu0 %v980, 64
    %v985 = vpop.permute.xlu0 %984
    %986 = vrot.lane.b32.xlu0 %v981, 64
    %v987 = vpop.permute.xlu0 %986
    %v990 = vadd.f32 %v135, %v985
    %v991 = vadd.f32 %v140, %v987
    %v992 = vtanh.pop %v990
    %v993 = vtanh.pop %v991
    %v994 = vsub.f32 1.0, %v968
    %v995 = vsub.f32 1.0, %v969
    %998 = vrot.lane.b32.xlu0 %v992, 96
    %v999 = vpop.permute.xlu0 %998
    %1000 = vrot.lane.b32.xlu0 %v993, 96
    %v1001 = vpop.permute.xlu0 %1000
    %v1004 = vmul.f32 %v994, %v999
    %v1005 = vmul.f32 %v995, %v1001
    %v1006 = vrot.slane %v865, 7
    %v1007 = vrot.slane %v866, 7
    %v1010 = vmul.f32 %v968, %v1006
    %v1011 = vmul.f32 %v969, %v1007
    %v1012 = vadd.f32 %v1004, %v1010
    %v1013 = vadd.f32 %v1005, %v1011
    %1016 = vrot.lane.b32.xlu0 %v1012, 96
    %v1017 = vpop.permute.xlu0 %1016
    %1018 = vrot.lane.b32.xlu0 %v1013, 96
    %v1019 = vpop.permute.xlu0 %1018
    %vm1022 = vcmask 259077
    %1023 = vst.msk [vmem:[#allocation2] sm:$0x20] %vm1022, %v1017
    %1024 = vst.msk [vmem:[#allocation2 + $0x8] sm:$0x20] %vm1022, %v1019
    %v1025 = vrot.slane %v1012, 5
    %v1026 = vrot.slane %v1013, 4
    %v1027 = vsel %vm295, %v1026, %v1025
    %1028 = vrot.lane.b32.xlu0 %v1027, 96
    %v1029 = vpop.permute.xlu0 %1028
    %v1030 = vsel %vm148, %v1029, 0
    %1032 = vmatprep.subr.mxu0 0.0
    %1033 = vmatpush1.msra.mxu0 %v143
    %1034 = vmatprep.subr.mxu0 0.0
    %1035 = vmatpush1.msra.mxu0 %v144
    %1036 = vmatprep.subr.mxu0 0.0
    %1037 = vmatpush1.msra.mxu0 %v145
    %1038 = vmatprep.subr.mxu0 0.0
    %1039 = vmatpush1.msra.mxu0 %v146
    %1040 = vmatprep.subr.mxu0 0.0
    %1041 = vmatpush1.msra.mxu0 0.0
    %1042 = vmatprep.subr.mxu0 0.0
    %1043 = vmatpush1.msra.mxu0 0.0
    %1044 = vmatprep.subr.mxu0 0.0
    %1045 = vmatpush1.msra.mxu0 0.0
    %1046 = vmatprep.subr.mxu0 0.0
    %1047 = vmatpush1.msra.mxu0 0.0
    %1048 = vmatprep.subr.mxu0 0.0
    %1049 = vmatpush1.msra.mxu0 0.0
    %1050 = vmatprep.subr.mxu0 0.0
    %1051 = vmatpush1.msra.mxu0 0.0
    %1052 = vmatprep.subr.mxu0 0.0
    %1053 = vmatpush1.msra.mxu0 0.0
    %1054 = vmatprep.subr.mxu0 0.0
    %1055 = vmatpush1.msra.mxu0 0.0
    %1056 = vmatprep.subr.mxu0 0.0
    %1057 = vmatpush1.msra.mxu0 0.0
    %1058 = vmatprep.subr.mxu0 0.0
    %1059 = vmatpush1.msra.mxu0 0.0
    %1060 = vmatprep.subr.mxu0 0.0
    %1061 = vmatpush1.msra.mxu0 0.0
    %1062 = vmatprep.subr.mxu0 0.0
    %1063 = vmatpush1.msra.mxu0 0.0
    %1064 = vmatprep.subr.mxu0 0.0
    %1065 = vmatpush1.msra.mxu0 0.0
    %1066 = vmatprep.subr.mxu0 0.0
    %1067 = vmatpush1.msra.mxu0 0.0
    %1068 = vmatprep.subr.mxu0 0.0
    %1069 = vmatpush1.msra.mxu0 0.0
    %1070 = vmatprep.subr.mxu0 0.0
    %1071 = vmatpush1.msra.mxu0 0.0
    %1072 = vmatprep.subr.mxu0 0.0
    %1073 = vmatpush1.msra.mxu0 0.0
    %1074 = vmatprep.subr.mxu0 0.0
    %1075 = vmatpush1.msra.mxu0 0.0
    %1076 = vmatprep.subr.mxu0 0.0
    %1077 = vmatpush1.msra.mxu0 0.0
    %1078 = vmatprep.subr.mxu0 0.0
    %1079 = vmatpush1.msra.mxu0 0.0
    %1080 = vmatprep.subr.mxu0 0.0
    %1081 = vmatpush1.msra.mxu0 0.0
    %1082 = vmatprep.subr.mxu0 0.0
    %1083 = vmatpush1.msra.mxu0 0.0
    %1084 = vmatprep.subr.mxu0 0.0
    %1085 = vmatpush1.msra.mxu0 0.0
    %1086 = vmatprep.subr.mxu0 0.0
    %1087 = vmatpush1.msra.mxu0 0.0
    %1088 = vmatprep.subr.mxu0 0.0
    %1089 = vmatpush1.msra.mxu0 0.0
    %1090 = vmatprep.subr.mxu0 0.0
    %1091 = vmatpush1.msra.mxu0 0.0
    %1092 = vmatprep.subr.mxu0 0.0
    %1093 = vmatpush1.msra.mxu0 0.0
    %1094 = vmatprep.subr.mxu0 0.0
    %1095 = vmatpush1.msra.mxu0 0.0
    %1096 = vmatprep.mubr.f32.mxu0 0.0
    %1097 = vmatmul.mubr.f32.gmra.mrb[0].mxu0 %v1030
    %v1098 = vpop.f32.mrb[0].mxu0
    %v1099 = vadd.f32 0.0, %v1098
    %v1100 = vpop.f32.mrb[0].mxu0
    %1101 = vdwg.mxu0
    %v1103 = vrot.slane %v1099, 2
    %v1104 = vrot.slane %v1099, 3
    %v1107 = vadd.f32 %v135, %v1103
    %v1108 = vadd.f32 %v140, %v1104
    %v1109 = vmul.f32 %v1107, 0.5
    %v1110 = vmul.f32 %v1108, 0.5
    %v1111 = vtanh.pop %v1109
    %v1112 = vtanh.pop %v1110
    %v1113 = vadd.f32 %v1111, 1.0
    %v1114 = vadd.f32 %v1112, 1.0
    %v1115 = vmul.f32 %v1113, 0.5
    %v1116 = vmul.f32 %v1114, 0.5
    %v1117 = vadd.f32 %v1099, %v242
    %v1119 = vrot.slane %v1117, 2
    %v1120 = vrot.slane %v1117, 3
    %1121 = vrot.lane.b32.xlu0 %v1119, 64
    %v1122 = vpop.permute.xlu0 %1121
    %1123 = vrot.lane.b32.xlu0 %v1120, 64
    %v1124 = vpop.permute.xlu0 %1123
    %v1127 = vmul.f32 %v1115, %v1122
    %v1128 = vmul.f32 %v1116, %v1124
    %1131 = vrot.lane.b32.xlu0 %v1127, 64
    %v1132 = vpop.permute.xlu0 %1131
    %1133 = vrot.lane.b32.xlu0 %v1128, 64
    %v1134 = vpop.permute.xlu0 %1133
    %v1137 = vadd.f32 %v135, %v1132
    %v1138 = vadd.f32 %v140, %v1134
    %v1139 = vtanh.pop %v1137
    %v1140 = vtanh.pop %v1138
    %v1141 = vsub.f32 1.0, %v1115
    %v1142 = vsub.f32 1.0, %v1116
    %1145 = vrot.lane.b32.xlu0 %v1139, 96
    %v1146 = vpop.permute.xlu0 %1145
    %1147 = vrot.lane.b32.xlu0 %v1140, 96
    %v1148 = vpop.permute.xlu0 %1147
    %v1151 = vmul.f32 %v1141, %v1146
    %v1152 = vmul.f32 %v1142, %v1148
    %v1153 = vrot.slane %v1012, 7
    %v1154 = vrot.slane %v1013, 7
    %v1157 = vmul.f32 %v1115, %v1153
    %v1158 = vmul.f32 %v1116, %v1154
    %v1159 = vadd.f32 %v1151, %v1157
    %v1160 = vadd.f32 %v1152, %v1158
    %1163 = vrot.lane.b32.xlu0 %v1159, 96
    %v1164 = vpop.permute.xlu0 %1163
    %1165 = vrot.lane.b32.xlu0 %v1160, 96
    %v1166 = vpop.permute.xlu0 %1165
    %vm1169 = vcmask 260102
    %1170 = vst.msk [vmem:[#allocation2] sm:$0x40] %vm1169, %v1164
    %1171 = vst.msk [vmem:[#allocation2 + $0x8] sm:$0x40] %vm1169, %v1166
    %v1172 = vrot.slane %v1159, 6
    %v1173 = vrot.slane %v1160, 5
    %v1174 = vsel %vm295, %v1173, %v1172
    %1175 = vrot.lane.b32.xlu0 %v1174, 96
    %v1176 = vpop.permute.xlu0 %1175
    %v1177 = vsel %vm148, %v1176, 0
    %1179 = vmatprep.subr.mxu0 0.0
    %1180 = vmatpush1.msra.mxu0 %v143
    %1181 = vmatprep.subr.mxu0 0.0
    %1182 = vmatpush1.msra.mxu0 %v144
    %1183 = vmatprep.subr.mxu0 0.0
    %1184 = vmatpush1.msra.mxu0 %v145
    %1185 = vmatprep.subr.mxu0 0.0
    %1186 = vmatpush1.msra.mxu0 %v146
    %1187 = vmatprep.subr.mxu0 0.0
    %1188 = vmatpush1.msra.mxu0 0.0
    %1189 = vmatprep.subr.mxu0 0.0
    %1190 = vmatpush1.msra.mxu0 0.0
    %1191 = vmatprep.subr.mxu0 0.0
    %1192 = vmatpush1.msra.mxu0 0.0
    %1193 = vmatprep.subr.mxu0 0.0
    %1194 = vmatpush1.msra.mxu0 0.0
    %1195 = vmatprep.subr.mxu0 0.0
    %1196 = vmatpush1.msra.mxu0 0.0
    %1197 = vmatprep.subr.mxu0 0.0
    %1198 = vmatpush1.msra.mxu0 0.0
    %1199 = vmatprep.subr.mxu0 0.0
    %1200 = vmatpush1.msra.mxu0 0.0
    %1201 = vmatprep.subr.mxu0 0.0
    %1202 = vmatpush1.msra.mxu0 0.0
    %1203 = vmatprep.subr.mxu0 0.0
    %1204 = vmatpush1.msra.mxu0 0.0
    %1205 = vmatprep.subr.mxu0 0.0
    %1206 = vmatpush1.msra.mxu0 0.0
    %1207 = vmatprep.subr.mxu0 0.0
    %1208 = vmatpush1.msra.mxu0 0.0
    %1209 = vmatprep.subr.mxu0 0.0
    %1210 = vmatpush1.msra.mxu0 0.0
    %1211 = vmatprep.subr.mxu0 0.0
    %1212 = vmatpush1.msra.mxu0 0.0
    %1213 = vmatprep.subr.mxu0 0.0
    %1214 = vmatpush1.msra.mxu0 0.0
    %1215 = vmatprep.subr.mxu0 0.0
    %1216 = vmatpush1.msra.mxu0 0.0
    %1217 = vmatprep.subr.mxu0 0.0
    %1218 = vmatpush1.msra.mxu0 0.0
    %1219 = vmatprep.subr.mxu0 0.0
    %1220 = vmatpush1.msra.mxu0 0.0
    %1221 = vmatprep.subr.mxu0 0.0
    %1222 = vmatpush1.msra.mxu0 0.0
    %1223 = vmatprep.subr.mxu0 0.0
    %1224 = vmatpush1.msra.mxu0 0.0
    %1225 = vmatprep.subr.mxu0 0.0
    %1226 = vmatpush1.msra.mxu0 0.0
    %1227 = vmatprep.subr.mxu0 0.0
    %1228 = vmatpush1.msra.mxu0 0.0
    %1229 = vmatprep.subr.mxu0 0.0
    %1230 = vmatpush1.msra.mxu0 0.0
    %1231 = vmatprep.subr.mxu0 0.0
    %1232 = vmatpush1.msra.mxu0 0.0
    %1233 = vmatprep.subr.mxu0 0.0
    %1234 = vmatpush1.msra.mxu0 0.0
    %1235 = vmatprep.subr.mxu0 0.0
    %1236 = vmatpush1.msra.mxu0 0.0
    %1237 = vmatprep.subr.mxu0 0.0
    %1238 = vmatpush1.msra.mxu0 0.0
    %1239 = vmatprep.subr.mxu0 0.0
    %1240 = vmatpush1.msra.mxu0 0.0
    %1241 = vmatprep.subr.mxu0 0.0
    %1242 = vmatpush1.msra.mxu0 0.0
    %1243 = vmatprep.mubr.f32.mxu0 0.0
    %1244 = vmatmul.mubr.f32.gmra.mrb[0].mxu0 %v1177
    %v1245 = vpop.f32.mrb[0].mxu0
    %v1246 = vadd.f32 0.0, %v1245
    %v1247 = vpop.f32.mrb[0].mxu0
    %1248 = vdwg.mxu0
    %v1250 = vrot.slane %v1246, 1
    %v1251 = vrot.slane %v1246, 2
    %v1254 = vadd.f32 %v135, %v1250
    %v1255 = vadd.f32 %v140, %v1251
    %v1256 = vmul.f32 %v1254, 0.5
    %v1257 = vmul.f32 %v1255, 0.5
    %v1258 = vtanh.pop %v1256
    %v1259 = vtanh.pop %v1257
    %v1260 = vadd.f32 %v1258, 1.0
    %v1261 = vadd.f32 %v1259, 1.0
    %v1262 = vmul.f32 %v1260, 0.5
    %v1263 = vmul.f32 %v1261, 0.5
    %v1264 = vadd.f32 %v1246, %v242
    %v1266 = vrot.slane %v1264, 1
    %v1267 = vrot.slane %v1264, 2
    %1268 = vrot.lane.b32.xlu0 %v1266, 64
    %v1269 = vpop.permute.xlu0 %1268
    %1270 = vrot.lane.b32.xlu0 %v1267, 64
    %v1271 = vpop.permute.xlu0 %1270
    %v1274 = vmul.f32 %v1262, %v1269
    %v1275 = vmul.f32 %v1263, %v1271
    %1278 = vrot.lane.b32.xlu0 %v1274, 64
    %v1279 = vpop.permute.xlu0 %1278
    %1280 = vrot.lane.b32.xlu0 %v1275, 64
    %v1281 = vpop.permute.xlu0 %1280
    %v1284 = vadd.f32 %v135, %v1279
    %v1285 = vadd.f32 %v140, %v1281
    %v1286 = vtanh.pop %v1284
    %v1287 = vtanh.pop %v1285
    %v1288 = vsub.f32 1.0, %v1262
    %v1289 = vsub.f32 1.0, %v1263
    %1292 = vrot.lane.b32.xlu0 %v1286, 96
    %v1293 = vpop.permute.xlu0 %1292
    %1294 = vrot.lane.b32.xlu0 %v1287, 96
    %v1295 = vpop.permute.xlu0 %1294
    %v1298 = vmul.f32 %v1288, %v1293
    %v1299 = vmul.f32 %v1289, %v1295
    %v1300 = vrot.slane %v1159, 7
    %v1301 = vrot.slane %v1160, 7
    %v1304 = vmul.f32 %v1262, %v1300
    %v1305 = vmul.f32 %v1263, %v1301
    %v1306 = vadd.f32 %v1298, %v1304
    %v1307 = vadd.f32 %v1299, %v1305
    %1310 = vrot.lane.b32.xlu0 %v1306, 96
    %v1311 = vpop.permute.xlu0 %1310
    %1312 = vrot.lane.b32.xlu0 %v1307, 96
    %v1313 = vpop.permute.xlu0 %1312
    %vm1316 = vcmask 261127
    %1317 = vst.msk [vmem:[#allocation2] sm:$0x80] %vm1316, %v1311
    %1318 = vst.msk [vmem:[#allocation2 + $0x8] sm:$0x80] %vm1316, %v1313
    %v1319 = vld [vmem:[#allocation2] sm:$0xff]
    %v1320 = vld [vmem:[#allocation2 + $0x8] sm:$0xff]
    %v1321 = vmul.f32 %v1319, %v1319
    %v1322 = vmul.f32 %v1320, %v1320
    %v1323 = vsel %vm148, %v1321, 0.0
    %1324 = vadd.xlane.f32.xlu0 %v1323
    %v1325 = vpop.xlane.xlu0 %1324
    %v1326 = vsel %vm148, %v1322, 0.0
    %1327 = vadd.xlane.f32.xlu0 %v1326
    %v1328 = vpop.xlane.xlu0 %1327
    %v1329 = vmax.f32 %v1325, 1e-24
    %v1330 = vmax.f32 %v1328, 1e-24
    %v1331 = vrsqrt.pop %v1329
    %v1332 = vrsqrt.pop %v1330
    %v1333 = vmul.f32 %v1319, %v1331
    %v1334 = vmul.f32 %v1320, %v1332
    %v1335 = vld [vmem:[%s6] sm:$0xff]
    %v1336 = vld [vmem:[%s6 + $0x8] sm:$0xff]
    %v1337 = vld [vmem:[%s6 + $0x10] sm:$0xff]
    %v1338 = vld [vmem:[%s6 + $0x18] sm:$0xff]
    %v1339 = vld [vmem:[%s7] sm:$0x1]
    %v1341 = vlaneseq
    %v1342 = vshrl.u32 %v1341, 7
    %v1343 = vsub.s32 0, %v1342
    %v1344 = vrot.slane %v1339, %v1343
    %v1347 = vsel %vm148, %v1333, 0
    %v1350 = vsel %vm148, %v1334, 0
    %1352 = vmatprep.subr.mxu0 0.0
    %1353 = vmatpush1.msra.mxu0 %v1335
    %1354 = vmatprep.subr.mxu0 0.0
    %1355 = vmatpush1.msra.mxu0 %v1336
    %1356 = vmatprep.subr.mxu0 0.0
    %1357 = vmatpush1.msra.mxu0 %v1337
    %1358 = vmatprep.subr.mxu0 0.0
    %1359 = vmatpush1.msra.mxu0 %v1338
    %1360 = vmatprep.subr.mxu0 0.0
    %1361 = vmatpush1.msra.mxu0 0.0
    %1362 = vmatprep.subr.mxu0 0.0
    %1363 = vmatpush1.msra.mxu0 0.0
    %1364 = vmatprep.subr.mxu0 0.0
    %1365 = vmatpush1.msra.mxu0 0.0
    %1366 = vmatprep.subr.mxu0 0.0
    %1367 = vmatpush1.msra.mxu0 0.0
    %1368 = vmatprep.subr.mxu0 0.0
    %1369 = vmatpush1.msra.mxu0 0.0
    %1370 = vmatprep.subr.mxu0 0.0
    %1371 = vmatpush1.msra.mxu0 0.0
    %1372 = vmatprep.subr.mxu0 0.0
    %1373 = vmatpush1.msra.mxu0 0.0
    %1374 = vmatprep.subr.mxu0 0.0
    %1375 = vmatpush1.msra.mxu0 0.0
    %1376 = vmatprep.subr.mxu0 0.0
    %1377 = vmatpush1.msra.mxu0 0.0
    %1378 = vmatprep.subr.mxu0 0.0
    %1379 = vmatpush1.msra.mxu0 0.0
    %1380 = vmatprep.subr.mxu0 0.0
    %1381 = vmatpush1.msra.mxu0 0.0
    %1382 = vmatprep.subr.mxu0 0.0
    %1383 = vmatpush1.msra.mxu0 0.0
    %1384 = vmatprep.subr.mxu0 0.0
    %1385 = vmatpush1.msra.mxu0 0.0
    %1386 = vmatprep.subr.mxu0 0.0
    %1387 = vmatpush1.msra.mxu0 0.0
    %1388 = vmatprep.subr.mxu0 0.0
    %1389 = vmatpush1.msra.mxu0 0.0
    %1390 = vmatprep.subr.mxu0 0.0
    %1391 = vmatpush1.msra.mxu0 0.0
    %1392 = vmatprep.subr.mxu0 0.0
    %1393 = vmatpush1.msra.mxu0 0.0
    %1394 = vmatprep.subr.mxu0 0.0
    %1395 = vmatpush1.msra.mxu0 0.0
    %1396 = vmatprep.subr.mxu0 0.0
    %1397 = vmatpush1.msra.mxu0 0.0
    %1398 = vmatprep.subr.mxu0 0.0
    %1399 = vmatpush1.msra.mxu0 0.0
    %1400 = vmatprep.subr.mxu0 0.0
    %1401 = vmatpush1.msra.mxu0 0.0
    %1402 = vmatprep.subr.mxu0 0.0
    %1403 = vmatpush1.msra.mxu0 0.0
    %1404 = vmatprep.subr.mxu0 0.0
    %1405 = vmatpush1.msra.mxu0 0.0
    %1406 = vmatprep.subr.mxu0 0.0
    %1407 = vmatpush1.msra.mxu0 0.0
    %1408 = vmatprep.subr.mxu0 0.0
    %1409 = vmatpush1.msra.mxu0 0.0
    %1410 = vmatprep.subr.mxu0 0.0
    %1411 = vmatpush1.msra.mxu0 0.0
    %1412 = vmatprep.subr.mxu0 0.0
    %1413 = vmatpush1.msra.mxu0 0.0
    %1414 = vmatprep.subr.mxu0 0.0
    %1415 = vmatpush1.msra.mxu0 0.0
    %1416 = vmatprep.mubr.f32.mxu0 0.0
    %1417 = vmatmul.mubr.f32.gmra.mrb[0].mxu0 %v1347
    %v1418 = vpop.f32.mrb[0].mxu0
    %v1419 = vadd.f32 %v1344, %v1418
    %v1420 = vpop.f32.mrb[0].mxu0
    %1421 = vmatprep.mubr.f32.mxu0 0.0
    %1422 = vmatmul.mubr.f32.gmra.mrb[0].mxu0 %v1350
    %v1423 = vpop.f32.mrb[0].mxu0
    %v1424 = vadd.f32 %v1344, %v1423
    %v1425 = vpop.f32.mrb[0].mxu0
    %1426 = vdwg.mxu0
    %v1427 = vtanh.pop %v1419
    %v1428 = vtanh.pop %v1424
    %v1429 = vld [vmem:[%s8] sm:$0xff]
    %v1430 = vld [vmem:[%s8 + $0x8] sm:$0xff]
    %v1431 = vld [vmem:[%s8 + $0x10] sm:$0xff]
    %v1432 = vld [vmem:[%s8 + $0x18] sm:$0xff]
    %v1433 = vld [vmem:[%s9] sm:$0x1]
    %v1435 = vlaneseq
    %v1436 = vshrl.u32 %v1435, 7
    %v1437 = vsub.s32 0, %v1436
    %v1438 = vrot.slane %v1433, %v1437
    %v1441 = vsel %vm148, %v1427, 0
    %v1444 = vsel %vm148, %v1428, 0
    %1446 = vmatprep.subr.mxu0 0.0
    %1447 = vmatpush1.msra.mxu0 %v1429
    %1448 = vmatprep.subr.mxu0 0.0
    %1449 = vmatpush1.msra.mxu0 %v1430
    %1450 = vmatprep.subr.mxu0 0.0
    %1451 = vmatpush1.msra.mxu0 %v1431
    %1452 = vmatprep.subr.mxu0 0.0
    %1453 = vmatpush1.msra.mxu0 %v1432
    %1454 = vmatprep.subr.mxu0 0.0
    %1455 = vmatpush1.msra.mxu0 0.0
    %1456 = vmatprep.subr.mxu0 0.0
    %1457 = vmatpush1.msra.mxu0 0.0
    %1458 = vmatprep.subr.mxu0 0.0
    %1459 = vmatpush1.msra.mxu0 0.0
    %1460 = vmatprep.subr.mxu0 0.0
    %1461 = vmatpush1.msra.mxu0 0.0
    %1462 = vmatprep.subr.mxu0 0.0
    %1463 = vmatpush1.msra.mxu0 0.0
    %1464 = vmatprep.subr.mxu0 0.0
    %1465 = vmatpush1.msra.mxu0 0.0
    %1466 = vmatprep.subr.mxu0 0.0
    %1467 = vmatpush1.msra.mxu0 0.0
    %1468 = vmatprep.subr.mxu0 0.0
    %1469 = vmatpush1.msra.mxu0 0.0
    %1470 = vmatprep.subr.mxu0 0.0
    %1471 = vmatpush1.msra.mxu0 0.0
    %1472 = vmatprep.subr.mxu0 0.0
    %1473 = vmatpush1.msra.mxu0 0.0
    %1474 = vmatprep.subr.mxu0 0.0
    %1475 = vmatpush1.msra.mxu0 0.0
    %1476 = vmatprep.subr.mxu0 0.0
    %1477 = vmatpush1.msra.mxu0 0.0
    %1478 = vmatprep.subr.mxu0 0.0
    %1479 = vmatpush1.msra.mxu0 0.0
    %1480 = vmatprep.subr.mxu0 0.0
    %1481 = vmatpush1.msra.mxu0 0.0
    %1482 = vmatprep.subr.mxu0 0.0
    %1483 = vmatpush1.msra.mxu0 0.0
    %1484 = vmatprep.subr.mxu0 0.0
    %1485 = vmatpush1.msra.mxu0 0.0
    %1486 = vmatprep.subr.mxu0 0.0
    %1487 = vmatpush1.msra.mxu0 0.0
    %1488 = vmatprep.subr.mxu0 0.0
    %1489 = vmatpush1.msra.mxu0 0.0
    %1490 = vmatprep.subr.mxu0 0.0
    %1491 = vmatpush1.msra.mxu0 0.0
    %1492 = vmatprep.subr.mxu0 0.0
    %1493 = vmatpush1.msra.mxu0 0.0
    %1494 = vmatprep.subr.mxu0 0.0
    %1495 = vmatpush1.msra.mxu0 0.0
    %1496 = vmatprep.subr.mxu0 0.0
    %1497 = vmatpush1.msra.mxu0 0.0
    %1498 = vmatprep.subr.mxu0 0.0
    %1499 = vmatpush1.msra.mxu0 0.0
    %1500 = vmatprep.subr.mxu0 0.0
    %1501 = vmatpush1.msra.mxu0 0.0
    %1502 = vmatprep.subr.mxu0 0.0
    %1503 = vmatpush1.msra.mxu0 0.0
    %1504 = vmatprep.subr.mxu0 0.0
    %1505 = vmatpush1.msra.mxu0 0.0
    %1506 = vmatprep.subr.mxu0 0.0
    %1507 = vmatpush1.msra.mxu0 0.0
    %1508 = vmatprep.subr.mxu0 0.0
    %1509 = vmatpush1.msra.mxu0 0.0
    %1510 = vmatprep.mubr.f32.mxu0 0.0
    %1511 = vmatmul.mubr.f32.gmra.mrb[0].mxu0 %v1441
    %v1512 = vpop.f32.mrb[0].mxu0
    %v1513 = vadd.f32 %v1438, %v1512
    %v1514 = vpop.f32.mrb[0].mxu0
    %1515 = vmatprep.mubr.f32.mxu0 0.0
    %1516 = vmatmul.mubr.f32.gmra.mrb[0].mxu0 %v1444
    %v1517 = vpop.f32.mrb[0].mxu0
    %v1518 = vadd.f32 %v1438, %v1517
    %v1519 = vpop.f32.mrb[0].mxu0
    %1520 = vdwg.mxu0
    %v1521 = vmul.f32 %v1513, 0.5
    %v1522 = vmul.f32 %v1518, 0.5
    %v1523 = vmul.f32 %v1521, 1.442695
    %v1524 = vpow.pop %v1523
    %v1525 = vmul.f32 %v1522, 1.442695
    %v1526 = vpow.pop %v1525
    %v1527 = vld [vmem:[%s1] sm:$0xff]
    %v1528 = vld [vmem:[%s1 + $0x8] sm:$0xff]
    %1531 = vrot.lane.b32.xlu0 %v1527, 16
    %v1532 = vpop.permute.xlu0 %1531
    %1533 = vrot.lane.b32.xlu0 %v1528, 16
    %v1534 = vpop.permute.xlu0 %1533
    %v1537 = vmul.f32 %v1524, %v1532
    %v1538 = vmul.f32 %v1526, %v1534
    %1541 = vrot.lane.b32.xlu0 %v1537, 112
    %v1542 = vpop.permute.xlu0 %1541
    %1543 = vrot.lane.b32.xlu0 %v1538, 112
    %v1544 = vpop.permute.xlu0 %1543
    %v1547 = vadd.f32 %v1513, %v1542
    %v1548 = vadd.f32 %v1518, %v1544
    %v1549 = vld [vmem:[%s10] sm:$0xff]
    %v1550 = vld [vmem:[%s10 + $0x8] sm:$0xff]
    %v1551 = vld [vmem:[%s11] sm:$0x1]
    %v1553 = vlaneseq
    %v1554 = vshrl.u32 %v1553, 7
    %v1555 = vsub.s32 0, %v1554
    %v1556 = vrot.slane %v1551, %v1555
    %v1559 = vsel %vm61, %v1547, 0
    %v1562 = vsel %vm61, %v1548, 0
    %1564 = vmatprep.subr.mxu0 0.0
    %1565 = vmatpush1.msra.mxu0 %v1549
    %1566 = vmatprep.subr.mxu0 0.0
    %1567 = vmatpush1.msra.mxu0 %v1550
    %1568 = vmatprep.subr.mxu0 0.0
    %1569 = vmatpush1.msra.mxu0 0.0
    %1570 = vmatprep.subr.mxu0 0.0
    %1571 = vmatpush1.msra.mxu0 0.0
    %1572 = vmatprep.subr.mxu0 0.0
    %1573 = vmatpush1.msra.mxu0 0.0
    %1574 = vmatprep.subr.mxu0 0.0
    %1575 = vmatpush1.msra.mxu0 0.0
    %1576 = vmatprep.subr.mxu0 0.0
    %1577 = vmatpush1.msra.mxu0 0.0
    %1578 = vmatprep.subr.mxu0 0.0
    %1579 = vmatpush1.msra.mxu0 0.0
    %1580 = vmatprep.subr.mxu0 0.0
    %1581 = vmatpush1.msra.mxu0 0.0
    %1582 = vmatprep.subr.mxu0 0.0
    %1583 = vmatpush1.msra.mxu0 0.0
    %1584 = vmatprep.subr.mxu0 0.0
    %1585 = vmatpush1.msra.mxu0 0.0
    %1586 = vmatprep.subr.mxu0 0.0
    %1587 = vmatpush1.msra.mxu0 0.0
    %1588 = vmatprep.subr.mxu0 0.0
    %1589 = vmatpush1.msra.mxu0 0.0
    %1590 = vmatprep.subr.mxu0 0.0
    %1591 = vmatpush1.msra.mxu0 0.0
    %1592 = vmatprep.subr.mxu0 0.0
    %1593 = vmatpush1.msra.mxu0 0.0
    %1594 = vmatprep.subr.mxu0 0.0
    %1595 = vmatpush1.msra.mxu0 0.0
    %1596 = vmatprep.subr.mxu0 0.0
    %1597 = vmatpush1.msra.mxu0 0.0
    %1598 = vmatprep.subr.mxu0 0.0
    %1599 = vmatpush1.msra.mxu0 0.0
    %1600 = vmatprep.subr.mxu0 0.0
    %1601 = vmatpush1.msra.mxu0 0.0
    %1602 = vmatprep.subr.mxu0 0.0
    %1603 = vmatpush1.msra.mxu0 0.0
    %1604 = vmatprep.subr.mxu0 0.0
    %1605 = vmatpush1.msra.mxu0 0.0
    %1606 = vmatprep.subr.mxu0 0.0
    %1607 = vmatpush1.msra.mxu0 0.0
    %1608 = vmatprep.subr.mxu0 0.0
    %1609 = vmatpush1.msra.mxu0 0.0
    %1610 = vmatprep.subr.mxu0 0.0
    %1611 = vmatpush1.msra.mxu0 0.0
    %1612 = vmatprep.subr.mxu0 0.0
    %1613 = vmatpush1.msra.mxu0 0.0
    %1614 = vmatprep.subr.mxu0 0.0
    %1615 = vmatpush1.msra.mxu0 0.0
    %1616 = vmatprep.subr.mxu0 0.0
    %1617 = vmatpush1.msra.mxu0 0.0
    %1618 = vmatprep.subr.mxu0 0.0
    %1619 = vmatpush1.msra.mxu0 0.0
    %1620 = vmatprep.subr.mxu0 0.0
    %1621 = vmatpush1.msra.mxu0 0.0
    %1622 = vmatprep.subr.mxu0 0.0
    %1623 = vmatpush1.msra.mxu0 0.0
    %1624 = vmatprep.subr.mxu0 0.0
    %1625 = vmatpush1.msra.mxu0 0.0
    %1626 = vmatprep.subr.mxu0 0.0
    %1627 = vmatpush1.msra.mxu0 0.0
    %1628 = vmatprep.mubr.f32.mxu0 0.0
    %1629 = vmatmul.mubr.f32.gmra.mrb[0].mxu0 %v1559
    %v1630 = vpop.f32.mrb[0].mxu0
    %v1631 = vadd.f32 %v1556, %v1630
    %v1632 = vpop.f32.mrb[0].mxu0
    %1633 = vmatprep.mubr.f32.mxu0 0.0
    %1634 = vmatmul.mubr.f32.gmra.mrb[0].mxu0 %v1562
    %v1635 = vpop.f32.mrb[0].mxu0
    %v1636 = vadd.f32 %v1556, %v1635
    %v1637 = vpop.f32.mrb[0].mxu0
    %1638 = vdwg.mxu0
    %v1639 = vtanh.pop %v1631
    %v1640 = vtanh.pop %v1636
    %v1641 = vld [vmem:[%s12] sm:$0xff]
    %v1642 = vld [vmem:[%s12 + $0x8] sm:$0xff]
    %v1643 = vld [vmem:[%s12 + $0x10] sm:$0xff]
    %v1644 = vld [vmem:[%s12 + $0x18] sm:$0xff]
    %v1645 = vld [vmem:[%s12 + $0x20] sm:$0xff]
    %v1646 = vld [vmem:[%s12 + $0x28] sm:$0xff]
    %v1647 = vld [vmem:[%s12 + $0x30] sm:$0xff]
    %v1648 = vld [vmem:[%s12 + $0x38] sm:$0xff]
    %v1649 = vld [vmem:[%s13] sm:$0x3]
    %v1651 = vlaneseq
    %v1652 = vshrl.u32 %v1651, 7
    %v1653 = vsub.s32 0, %v1652
    %v1654 = vrot.slane %v1649, %v1653
    %v1655 = vlaneseq
    %v1656 = vshrl.u32 %v1655, 7
    %v1657 = vsub.s32 1, %v1656
    %v1658 = vrot.slane %v1649, %v1657
    %v1662 = vsel %vm148, %v1639, 0
    %v1665 = vsel %vm148, %v1640, 0
    %1667 = vmatprep.subr.mxu0 %v1642
    %1668 = vmatpush1.msra.mxu0 %v1641
    %1669 = vmatprep.subr.mxu0 %v1644
    %1670 = vmatpush1.msra.mxu0 %v1643
    %1671 = vmatprep.subr.mxu0 %v1646
    %1672 = vmatpush1.msra.mxu0 %v1645
    %1673 = vmatprep.subr.mxu0 %v1648
    %1674 = vmatpush1.msra.mxu0 %v1647
    %1675 = vmatprep.subr.mxu0 0.0
    %1676 = vmatpush1.msra.mxu0 0.0
    %1677 = vmatprep.subr.mxu0 0.0
    %1678 = vmatpush1.msra.mxu0 0.0
    %1679 = vmatprep.subr.mxu0 0.0
    %1680 = vmatpush1.msra.mxu0 0.0
    %1681 = vmatprep.subr.mxu0 0.0
    %1682 = vmatpush1.msra.mxu0 0.0
    %1683 = vmatprep.subr.mxu0 0.0
    %1684 = vmatpush1.msra.mxu0 0.0
    %1685 = vmatprep.subr.mxu0 0.0
    %1686 = vmatpush1.msra.mxu0 0.0
    %1687 = vmatprep.subr.mxu0 0.0
    %1688 = vmatpush1.msra.mxu0 0.0
    %1689 = vmatprep.subr.mxu0 0.0
    %1690 = vmatpush1.msra.mxu0 0.0
    %1691 = vmatprep.subr.mxu0 0.0
    %1692 = vmatpush1.msra.mxu0 0.0
    %1693 = vmatprep.subr.mxu0 0.0
    %1694 = vmatpush1.msra.mxu0 0.0
    %1695 = vmatprep.subr.mxu0 0.0
    %1696 = vmatpush1.msra.mxu0 0.0
    %1697 = vmatprep.subr.mxu0 0.0
    %1698 = vmatpush1.msra.mxu0 0.0
    %1699 = vmatprep.subr.mxu0 0.0
    %1700 = vmatpush1.msra.mxu0 0.0
    %1701 = vmatprep.subr.mxu0 0.0
    %1702 = vmatpush1.msra.mxu0 0.0
    %1703 = vmatprep.subr.mxu0 0.0
    %1704 = vmatpush1.msra.mxu0 0.0
    %1705 = vmatprep.subr.mxu0 0.0
    %1706 = vmatpush1.msra.mxu0 0.0
    %1707 = vmatprep.subr.mxu0 0.0
    %1708 = vmatpush1.msra.mxu0 0.0
    %1709 = vmatprep.subr.mxu0 0.0
    %1710 = vmatpush1.msra.mxu0 0.0
    %1711 = vmatprep.subr.mxu0 0.0
    %1712 = vmatpush1.msra.mxu0 0.0
    %1713 = vmatprep.subr.mxu0 0.0
    %1714 = vmatpush1.msra.mxu0 0.0
    %1715 = vmatprep.subr.mxu0 0.0
    %1716 = vmatpush1.msra.mxu0 0.0
    %1717 = vmatprep.subr.mxu0 0.0
    %1718 = vmatpush1.msra.mxu0 0.0
    %1719 = vmatprep.subr.mxu0 0.0
    %1720 = vmatpush1.msra.mxu0 0.0
    %1721 = vmatprep.subr.mxu0 0.0
    %1722 = vmatpush1.msra.mxu0 0.0
    %1723 = vmatprep.subr.mxu0 0.0
    %1724 = vmatpush1.msra.mxu0 0.0
    %1725 = vmatprep.subr.mxu0 0.0
    %1726 = vmatpush1.msra.mxu0 0.0
    %1727 = vmatprep.subr.mxu0 0.0
    %1728 = vmatpush1.msra.mxu0 0.0
    %1729 = vmatprep.subr.mxu0 0.0
    %1730 = vmatpush1.msra.mxu0 0.0
    %1731 = vmatprep.mubr.f32.mxu0 0.0
    %1732 = vmatmul.mubr.f32.gmra.mrb[0].mxu0 %v1662
    %v1733 = vpop.f32.mrb[0].mxu0
    %v1734 = vadd.f32 %v1654, %v1733
    %v1735 = vpop.f32.mrb[0].mxu0
    %v1736 = vadd.f32 %v1658, %v1735
    %1737 = vmatprep.mubr.f32.mxu0 0.0
    %1738 = vmatmul.mubr.f32.gmra.mrb[0].mxu0 %v1665
    %v1739 = vpop.f32.mrb[0].mxu0
    %v1740 = vadd.f32 %v1654, %v1739
    %v1741 = vpop.f32.mrb[0].mxu0
    %v1742 = vadd.f32 %v1658, %v1741
    %1743 = vdwg.mxu0
    %1744 = vst [vmem:[#allocation3] sm:$0xff] %v1734
    %1745 = vst [vmem:[#allocation3 + $0x8] sm:$0xff] %v1736
    %1746 = vst [vmem:[#allocation3 + $0x10] sm:$0xff] %v1740
    %1747 = vst [vmem:[#allocation3 + $0x18] sm:$0xff] %v1742
    %1748 = vst.msk [vmem:[%s15] sm:$0xff] %vm148, %v1513
    %1749 = vst.msk [vmem:[%s15 + $0x8] sm:$0xff] %vm148, %v1518
    // Predicated region
    $region58: #{seqvae_forward_pallas.1} parent=1 // pred_check
      _
    $region59: #{seqvae_forward_pallas.1} parent=1 // pred_check_branch
      %1751 = sbr.rel (0) target = $region61
    $region60: #{seqvae_forward_pallas.1} parent=1 // pred_region
      %s1753 = ssub.s32 512, 512
      %1754 = vsyncadd [#allocation4], %s1753
      %s1755 = sshll.u32 [#allocation3], 4
      %s1756 = int_to_ptr.vmem [resolvable:$true] %s1755
      %1761 = dma.vmem_to_hbm [thread:$0]  %s1756, 512, %s14, [#allocation4], 256, 256, 16
    $region61: #{seqvae_forward_pallas.1} parent=1 // pred_fallthru
      _
    // Predicated region
    $region62: #{seqvae_forward_pallas.1} parent=1 // pred_check
      _
    $region63: #{seqvae_forward_pallas.1} parent=1 // pred_check_branch
      %1763 = sbr.rel (0) target = $region65
    $region64: #{seqvae_forward_pallas.1} parent=1 // pred_region
      _
    $region65: #{seqvae_forward_pallas.1} parent=1 // pred_fallthru
      _
    // Predicated region
    $region66: #{seqvae_forward_pallas.1} parent=1 // pred_check
      _
    $region67: #{seqvae_forward_pallas.1} parent=1 // pred_check_branch
      %1765 = sbr.rel (0) target = $region69
    $region68: #{seqvae_forward_pallas.1} parent=1 // pred_region
      %1766 = dma.done [#allocation4], 512
    $region69: #{seqvae_forward_pallas.1} parent=1 // pred_fallthru
      _
    // Predicated region
    $region70: #{seqvae_forward_pallas.1} parent=1 // pred_check
      _
    $region71: #{seqvae_forward_pallas.1} parent=1 // pred_check_branch
      %1768 = sbr.rel (0) target = $region73
    $region72: #{seqvae_forward_pallas.1} parent=1 // pred_region
      _
    $region73: #{seqvae_forward_pallas.1} parent=1 // pred_fallthru
      _
    %1769 = vsyncpa [#allocation4], 1

</llo_original>
